<compile_context>
chip_gen: v7x
topology: tpu7x:2x2x1
jax: 0.10.0
libtpu: 0.0.40
codegen_flags: <defaults>
</compile_context>

<pallas_src>
import jax
import jax.numpy as jnp
from jax import lax
from jax.experimental import pallas as pl
from jax.experimental.pallas import tpu as pltpu


def sentiment_lstm_kernel(
    ids_ref,    # (T*Bp, 1) int32  time-major token ids (row t*Bp + b)
    et0_ref,    # (V, 4H)  bf16   embedding @ W_ih0^T       (g-gate cols scaled x2)
    whh0_ref,   # (H, 4H)  bf16   W_hh0^T                   (g-gate cols scaled x2)
    b0_ref,     # (1, 4H)  f32    b_ih0 + b_hh0             (g-gate part scaled x2)
    w1_ref,     # (2H, 4H) bf16   vstack([W_ih1^T, W_hh1^T])(g-gate cols scaled x2)
    b1_ref,     # (1, 4H)  f32    b_ih1 + b_hh1             (g-gate part scaled x2)
    wcls_ref,   # (H, 1)   bf16   classifier weight^T
    bcls_ref,   # (1, 1)   f32
    out_ref,    # (Bp, 1)  f32    sigmoid(classifier(h_final))
):
    Bp = out_ref.shape[0]
    H = whh0_ref.shape[0]
    V = et0_ref.shape[0]
    T = ids_ref.shape[0] // Bp

    # ---- fused embedding gather + layer-0 input projection ------------------
    # one-hot(ids) @ (embedding @ W_ih0) selects exactly the embedded rows'
    # projections (row-selection commutes with the right matmul): one MXU pass.
    ids = ids_ref[...]                                                # (T*Bp, 1)
    onehot = (ids == lax.broadcasted_iota(jnp.int32, (T * Bp, V), 1)
              ).astype(jnp.bfloat16)                                  # (T*Bp, V)
    g0_all = (jnp.dot(onehot, et0_ref[...],
                      preferred_element_type=jnp.float32)
              + b0_ref[...])                                          # (T*Bp, 4H)

    whh0 = whh0_ref[...]
    w1 = w1_ref[...]
    b1 = b1_ref[...]

    def cell(gates, c_prev):
        # Single full-width sigmoid pass; g-gate columns were pre-scaled by 2,
        # so tanh(a) = 2*sigmoid(2a) - 1 is recovered on the 32-lane slice.
        s = jax.nn.sigmoid(gates)
        i = s[:, 0 * H:1 * H]
        f = s[:, 1 * H:2 * H]
        g = 2.0 * s[:, 2 * H:3 * H] - 1.0
        o = s[:, 3 * H:4 * H]
        c_new = f * c_prev + i * g
        h_new = o * jnp.tanh(c_new)
        return h_new, c_new

    zeros = jnp.zeros((Bp, H), jnp.float32)   # h_0 / c_0 zeros, as in the PyTorch forward
    h0, c0, h1, c1 = zeros, zeros, zeros, zeros

    # ---- wavefront-interleaved 2-layer recurrence ----------------------------
    # Wavefront step k runs layer-0 step k and layer-1 step k-1; both read the
    # same h0_{k-1}, so the two per-step matmuls are independent and pipeline
    # in the MXU. Statically unrolled (T is small) for scheduler visibility.
    for k in range(T + 1):
        if k >= 1:   # layer-1 step k-1: [h0_{k-1}, h1_{k-2}] @ [W_ih1; W_hh1]
            x1 = jnp.concatenate([h0, h1], axis=1).astype(jnp.bfloat16)  # (Bp, 2H)
            g1 = jnp.dot(x1, w1, preferred_element_type=jnp.float32) + b1
            h1, c1 = cell(g1, c1)
        if k < T:    # layer-0 step k
            g0 = (g0_all[k * Bp:(k + 1) * Bp, :]
                  + jnp.dot(h0.astype(jnp.bfloat16), whh0,
                            preferred_element_type=jnp.float32))
            h0, c0 = cell(g0, c0)

    # Classifier on the final hidden state of the last layer.
    # TODO(synk): the module's fc head (Linear+ReLU+Dropout) is dead code in the
    # PyTorch forward (its output is never used) and Dropout is inference-identity;
    # both omitted.
    logits = (jnp.dot(h1.astype(jnp.bfloat16), wcls_ref[...],
                      preferred_element_type=jnp.float32) + bcls_ref[...])
    out_ref[...] = jax.nn.sigmoid(logits)


def prepare_params(params):
    """One-time weight prep (module-init analogue): fold the embedding into the
    layer-0 input projection, stack layer-1 weights, pre-scale g-gate columns
    by 2 (tanh via sigmoid), and cast MXU operands to bf16 (biases stay f32)."""
    H = params["whh0"].shape[0]

    def scale_g(a):  # scale the g-gate (2H:3H) columns by 2
        return a.at[..., 2 * H:3 * H].multiply(2.0)

    emb = params["embedding"].astype(jnp.float32)
    et0 = scale_g(emb @ params["wih0"]).astype(jnp.bfloat16)           # (V, 4H)
    whh0 = scale_g(params["whh0"]).astype(jnp.bfloat16)                # (H, 4H)
    b0 = scale_g(params["b0"]).astype(jnp.float32)                     # (1, 4H)
    w1 = scale_g(jnp.concatenate([params["wih1"], params["whh1"]],
                                 axis=0)).astype(jnp.bfloat16)         # (2H, 4H)
    b1 = scale_g(params["b1"]).astype(jnp.float32)                     # (1, 4H)
    wcls = params["wcls"].astype(jnp.bfloat16)                         # (H, 1)
    bcls = params["bcls"].astype(jnp.float32)                          # (1, 1)
    return dict(et0=et0, whh0=whh0, b0=b0, w1=w1, b1=b1,
                wcls=wcls, bcls=bcls, H=H, V=emb.shape[0])


def sentiment_lstm_forward(x_ids, prep):
    """x_ids: (B, T) int32 token ids. Returns (B, 1) sigmoid probabilities."""
    B, T = x_ids.shape
    H, V = prep["H"], prep["V"]

    # Keep the batch a multiple of 8 so per-timestep slices of the (T*Bp, 4H)
    # slab land on sublane-tile boundaries.
    Bp = max(8, ((B + 7) // 8) * 8)
    if Bp != B:
        x_ids = jnp.pad(x_ids, ((0, Bp - B), (0, 0)))

    # Time-major ids column: row t*Bp + b  <->  (time t, batch b).
    ids_col = x_ids.T.reshape(T * Bp, 1).astype(jnp.int32)

    # Single batch block, grid=(1,): at these sizes the serial per-step
    # recurrence dominates, so splitting the batch across grid steps only
    # repeats the chain (sequential grid on v5e/v6e); on v7x a 2-TC batch
    # split pays off only once per-block batch is ~>=128-256 rows.
    grid_spec = pltpu.PrefetchScalarGridSpec(
        num_scalar_prefetch=0,
        grid=(1,),
        in_specs=[
            pl.BlockSpec((T * Bp, 1), lambda i: (0, 0)),      # ids (time-major)
            pl.BlockSpec((V, 4 * H), lambda i: (0, 0)),       # emb @ wih0 (bf16)
            pl.BlockSpec((H, 4 * H), lambda i: (0, 0)),       # whh0 (bf16)
            pl.BlockSpec((1, 4 * H), lambda i: (0, 0)),       # b0
            pl.BlockSpec((2 * H, 4 * H), lambda i: (0, 0)),   # [wih1; whh1] (bf16)
            pl.BlockSpec((1, 4 * H), lambda i: (0, 0)),       # b1
            pl.BlockSpec((H, 1), lambda i: (0, 0)),           # wcls (bf16)
            pl.BlockSpec((1, 1), lambda i: (0, 0)),           # bcls
        ],
        out_specs=pl.BlockSpec((Bp, 1), lambda i: (0, 0)),
    )
    # TODO(synk): at much larger batch, emit a lane-dense (1, B) output slab
    # instead of (Bp, 1) to avoid masked vst partial stores on writeback.

    out = pl.pallas_call(
        sentiment_lstm_kernel,
        out_shape=jax.ShapeDtypeStruct((Bp, 1), jnp.float32),
        grid_spec=grid_spec,
        compiler_params=pltpu.CompilerParams(
            dimension_semantics=("arbitrary",)),
    )(ids_col, prep["et0"], prep["whh0"], prep["b0"],
      prep["w1"], prep["b1"], prep["wcls"], prep["bcls"])
    return out[:B]


def _reference_forward(x_ids, params):
    """Pure-JAX f32 reference mirroring the PyTorch forward."""
    emb = params["embedding"]
    embeds = jnp.take(emb, x_ids, axis=0).astype(jnp.float32)   # (B, T, E)
    B = embeds.shape[0]
    H = params["whh0"].shape[0]

    def lstm_layer(xs, wih, whh, b):                            # xs: (T, B, in)
        def step(carry, x_t):
            h, c = carry
            gates = x_t @ wih + h @ whh + b
            i = jax.nn.sigmoid(gates[:, 0 * H:1 * H])
            f = jax.nn.sigmoid(gates[:, 1 * H:2 * H])
            g = jnp.tanh(gates[:, 2 * H:3 * H])
            o = jax.nn.sigmoid(gates[:, 3 * H:4 * H])
            c = f * c + i * g
            h = o * jnp.tanh(c)
            return (h, c), h
        init = (jnp.zeros((B, H), jnp.float32), jnp.zeros((B, H), jnp.float32))
        (h, _), hs = lax.scan(step, init, xs)
        return hs, h

    xs = jnp.transpose(embeds, (1, 0, 2))                       # (T, B, E)
    hs0, _ = lstm_layer(xs, params["wih0"], params["whh0"], params["b0"])
    _, h1 = lstm_layer(hs0, params["wih1"], params["whh1"], params["b1"])
    logits = h1 @ params["wcls"] + params["bcls"]
    return jax.nn.sigmoid(logits)


if __name__ == "__main__":
    key = jax.random.PRNGKey(0)

    # Small shapes implied by the module. The PyTorch forward applies
    # `classifier` (Linear(linear_hidden_size, 1)) directly to h_final, which
    # only typechecks when lstm_hidden_size == linear_hidden_size; honored here.
    VOCAB, E = 64, 32          # embedding_matrix: (vocab, embed_dim)
    H = 32                     # lstm_hidden_size (== linear_hidden_size)
    B, T = 16, 8               # batch, sequence length

    ks = jax.random.split(key, 10)
    s = 1.0 / jnp.sqrt(jnp.float32(H))
    params = {
        "embedding": jax.random.normal(ks[0], (VOCAB, E), jnp.float32) * 0.1,
        # layer 0
        "wih0": jax.random.uniform(ks[1], (E, 4 * H), jnp.float32, -s, s),
        "whh0": jax.random.uniform(ks[2], (H, 4 * H), jnp.float32, -s, s),
        "b0":   jax.random.uniform(ks[3], (1, 4 * H), jnp.float32, -s, s),
        # layer 1
        "wih1": jax.random.uniform(ks[4], (H, 4 * H), jnp.float32, -s, s),
        "whh1": jax.random.uniform(ks[5], (H, 4 * H), jnp.float32, -s, s),
        "b1":   jax.random.uniform(ks[6], (1, 4 * H), jnp.float32, -s, s),
        # classifier
        "wcls": jax.random.uniform(ks[7], (H, 1), jnp.float32, -s, s),
        "bcls": jax.random.uniform(ks[8], (1, 1), jnp.float32, -s, s),
    }

    x_ids = jax.random.randint(ks[9], (B, T), 0, VOCAB, dtype=jnp.int32)

    prep = prepare_params(params)
    out = sentiment_lstm_forward(x_ids, prep)
    out = jax.block_until_ready(out)

    ref = jax.block_until_ready(_reference_forward(x_ids, params))

    assert out.shape == (B, 1)
    assert bool(jnp.all((out >= 0.0) & (out <= 1.0)))
    # bf16 MXU operands (f32 accumulation) vs. the f32 reference: tolerance
    # loosened per the review's correctness note.
    assert bool(jnp.allclose(out, ref, atol=2e-2, rtol=2e-2)), "mismatch vs reference"
    print("KERNEL_OK")
</pallas_src>

<mosaic_0001>
module attributes {stable_mosaic.version = 11 : i64} {
  func.func @sentiment_lstm_kernel(%arg0: i32, %arg1: memref<128x1xi32, #tpu.memory_space<vmem>>, %arg2: memref<64x128xbf16, #tpu.memory_space<vmem>>, %arg3: memref<32x128xbf16, #tpu.memory_space<vmem>>, %arg4: memref<1x128xf32, #tpu.memory_space<vmem>>, %arg5: memref<64x128xbf16, #tpu.memory_space<vmem>>, %arg6: memref<1x128xf32, #tpu.memory_space<vmem>>, %arg7: memref<32x1xbf16, #tpu.memory_space<vmem>>, %arg8: memref<1x1xf32, #tpu.memory_space<vmem>>, %arg9: memref<16x1xf32, #tpu.memory_space<vmem>>) attributes {dimension_semantics = [#tpu.dimension_semantics<arbitrary>], iteration_bounds = array<i64: 1>, scalar_prefetch = 0 : i64, scratch_operands = 0 : i64, tpu.core_type = #tpu.core_type<tc>, window_params = [{pipeline_mode = #tpu.pipeline_mode<synchronous>, transform_indices = @transform_0, window_bounds = array<i64: 128, 1>}, {pipeline_mode = #tpu.pipeline_mode<synchronous>, transform_indices = @transform_1, window_bounds = array<i64: 64, 128>}, {pipeline_mode = #tpu.pipeline_mode<synchronous>, transform_indices = @transform_2, window_bounds = array<i64: 32, 128>}, {pipeline_mode = #tpu.pipeline_mode<synchronous>, transform_indices = @transform_3, window_bounds = array<i64: 1, 128>}, {pipeline_mode = #tpu.pipeline_mode<synchronous>, transform_indices = @transform_4, window_bounds = array<i64: 64, 128>}, {pipeline_mode = #tpu.pipeline_mode<synchronous>, transform_indices = @transform_5, window_bounds = array<i64: 1, 128>}, {pipeline_mode = #tpu.pipeline_mode<synchronous>, transform_indices = @transform_6, window_bounds = array<i64: 32, 1>}, {pipeline_mode = #tpu.pipeline_mode<synchronous>, transform_indices = @transform_7, window_bounds = array<i64: 1, 1>}, {pipeline_mode = #tpu.pipeline_mode<synchronous>, transform_indices = @transform_8, window_bounds = array<i64: 16, 1>}]} {
    %c0 = arith.constant 0 : index
    %c0_0 = arith.constant 0 : index
    %0 = vector.load %arg1[%c0, %c0_0] : memref<128x1xi32, #tpu.memory_space<vmem>>, vector<128x1xi32>
    %1 = tpu.iota {dimensions = array<i32: 1>} : vector<128x64xi32>
    %2 = vector.broadcast %0 : vector<128x1xi32> to vector<128x64xi32>
    %3 = arith.cmpi eq, %2, %1 : vector<128x64xi32>
    %4 = arith.extui %3 : vector<128x64xi1> to vector<128x64xi32>
    %5 = arith.sitofp %4 : vector<128x64xi32> to vector<128x64xf32>
    %6 = arith.truncf %5 : vector<128x64xf32> to vector<128x64xbf16>
    %c0_1 = arith.constant 0 : index
    %c0_2 = arith.constant 0 : index
    %7 = vector.load %arg2[%c0_1, %c0_2] : memref<64x128xbf16, #tpu.memory_space<vmem>>, vector<64x128xbf16>
    %cst = arith.constant dense<0.000000e+00> : vector<128x128xf32>
    %8 = tpu.matmul %6, %7, %cst {dimension_numbers = #tpu.dot_dimension_numbers<[1], [0], [0], [1], [0, 0, 1, 1], [], []>} : vector<128x64xbf16>, vector<64x128xbf16>, vector<128x128xf32> -> vector<128x128xf32>
    %c0_3 = arith.constant 0 : index
    %c0_4 = arith.constant 0 : index
    %9 = vector.load %arg4[%c0_3, %c0_4] : memref<1x128xf32, #tpu.memory_space<vmem>>, vector<1x128xf32>
    %10 = vector.broadcast %9 : vector<1x128xf32> to vector<128x128xf32>
    %11 = arith.addf %8, %10 : vector<128x128xf32>
    %c0_5 = arith.constant 0 : index
    %c0_6 = arith.constant 0 : index
    %12 = vector.load %arg3[%c0_5, %c0_6] : memref<32x128xbf16, #tpu.memory_space<vmem>>, vector<32x128xbf16>
    %c0_7 = arith.constant 0 : index
    %c0_8 = arith.constant 0 : index
    %13 = vector.load %arg5[%c0_7, %c0_8] : memref<64x128xbf16, #tpu.memory_space<vmem>>, vector<64x128xbf16>
    %c0_9 = arith.constant 0 : index
    %c0_10 = arith.constant 0 : index
    %14 = vector.load %arg6[%c0_9, %c0_10] : memref<1x128xf32, #tpu.memory_space<vmem>>, vector<1x128xf32>
    %cst_11 = arith.constant 0.000000e+00 : f32
    %15 = vector.broadcast %cst_11 : f32 to vector<16x32xf32>
    %16 = vector.extract_strided_slice %11 {offsets = [0, 0], sizes = [16, 128], strides = [1, 1]} : vector<128x128xf32> to vector<16x128xf32>
    %17 = arith.truncf %15 : vector<16x32xf32> to vector<16x32xbf16>
    %cst_12 = arith.constant dense<0.000000e+00> : vector<16x128xf32>
    %18 = tpu.matmul %17, %12, %cst_12 {dimension_numbers = #tpu.dot_dimension_numbers<[1], [0], [0], [1], [0, 0, 1, 1], [], []>} : vector<16x32xbf16>, vector<32x128xbf16>, vector<16x128xf32> -> vector<16x128xf32>
    %19 = arith.addf %16, %18 : vector<16x128xf32>
    %20 = arith.negf %19 : vector<16x128xf32>
    %21 = math.exp %20 : vector<16x128xf32>
    %cst_13 = arith.constant 1.000000e+00 : f32
    %22 = vector.broadcast %cst_13 : f32 to vector<16x128xf32>
    %23 = arith.addf %22, %21 : vector<16x128xf32>
    %24 = arith.divf %22, %23 : vector<16x128xf32>
    %25 = vector.extract_strided_slice %24 {offsets = [0, 0], sizes = [16, 32], strides = [1, 1]} : vector<16x128xf32> to vector<16x32xf32>
    %26 = vector.extract_strided_slice %24 {offsets = [0, 32], sizes = [16, 32], strides = [1, 1]} : vector<16x128xf32> to vector<16x32xf32>
    %27 = vector.extract_strided_slice %24 {offsets = [0, 64], sizes = [16, 32], strides = [1, 1]} : vector<16x128xf32> to vector<16x32xf32>
    %cst_14 = arith.constant 2.000000e+00 : f32
    %28 = vector.broadcast %cst_14 : f32 to vector<16x32xf32>
    %29 = arith.mulf %28, %27 : vector<16x32xf32>
    %cst_15 = arith.constant 1.000000e+00 : f32
    %30 = vector.broadcast %cst_15 : f32 to vector<16x32xf32>
    %31 = arith.subf %29, %30 : vector<16x32xf32>
    %32 = vector.extract_strided_slice %24 {offsets = [0, 96], sizes = [16, 32], strides = [1, 1]} : vector<16x128xf32> to vector<16x32xf32>
    %33 = arith.mulf %26, %15 : vector<16x32xf32>
    %34 = arith.mulf %25, %31 : vector<16x32xf32>
    %35 = arith.addf %33, %34 : vector<16x32xf32>
    %36 = math.tanh %35 : vector<16x32xf32>
    %37 = arith.mulf %32, %36 : vector<16x32xf32>
    %38 = tpu.concatenate %37, %15 in 1 : vector<16x32xf32>, vector<16x32xf32> -> vector<16x64xf32>
    %39 = arith.truncf %38 : vector<16x64xf32> to vector<16x64xbf16>
    %cst_16 = arith.constant dense<0.000000e+00> : vector<16x128xf32>
    %40 = tpu.matmul %39, %13, %cst_16 {dimension_numbers = #tpu.dot_dimension_numbers<[1], [0], [0], [1], [0, 0, 1, 1], [], []>} : vector<16x64xbf16>, vector<64x128xbf16>, vector<16x128xf32> -> vector<16x128xf32>
    %41 = vector.broadcast %14 : vector<1x128xf32> to vector<16x128xf32>
    %42 = arith.addf %40, %41 : vector<16x128xf32>
    %43 = arith.negf %42 : vector<16x128xf32>
    %44 = math.exp %43 : vector<16x128xf32>
    %cst_17 = arith.constant 1.000000e+00 : f32
    %45 = vector.broadcast %cst_17 : f32 to vector<16x128xf32>
    %46 = arith.addf %45, %44 : vector<16x128xf32>
    %47 = arith.divf %45, %46 : vector<16x128xf32>
    %48 = vector.extract_strided_slice %47 {offsets = [0, 0], sizes = [16, 32], strides = [1, 1]} : vector<16x128xf32> to vector<16x32xf32>
    %49 = vector.extract_strided_slice %47 {offsets = [0, 32], sizes = [16, 32], strides = [1, 1]} : vector<16x128xf32> to vector<16x32xf32>
    %50 = vector.extract_strided_slice %47 {offsets = [0, 64], sizes = [16, 32], strides = [1, 1]} : vector<16x128xf32> to vector<16x32xf32>
    %cst_18 = arith.constant 2.000000e+00 : f32
    %51 = vector.broadcast %cst_18 : f32 to vector<16x32xf32>
    %52 = arith.mulf %51, %50 : vector<16x32xf32>
    %cst_19 = arith.constant 1.000000e+00 : f32
    %53 = vector.broadcast %cst_19 : f32 to vector<16x32xf32>
    %54 = arith.subf %52, %53 : vector<16x32xf32>
    %55 = vector.extract_strided_slice %47 {offsets = [0, 96], sizes = [16, 32], strides = [1, 1]} : vector<16x128xf32> to vector<16x32xf32>
    %56 = arith.mulf %49, %15 : vector<16x32xf32>
    %57 = arith.mulf %48, %54 : vector<16x32xf32>
    %58 = arith.addf %56, %57 : vector<16x32xf32>
    %59 = math.tanh %58 : vector<16x32xf32>
    %60 = arith.mulf %55, %59 : vector<16x32xf32>
    %61 = vector.extract_strided_slice %11 {offsets = [16, 0], sizes = [16, 128], strides = [1, 1]} : vector<128x128xf32> to vector<16x128xf32>
    %62 = arith.truncf %37 : vector<16x32xf32> to vector<16x32xbf16>
    %cst_20 = arith.constant dense<0.000000e+00> : vector<16x128xf32>
    %63 = tpu.matmul %62, %12, %cst_20 {dimension_numbers = #tpu.dot_dimension_numbers<[1], [0], [0], [1], [0, 0, 1, 1], [], []>} : vector<16x32xbf16>, vector<32x128xbf16>, vector<16x128xf32> -> vector<16x128xf32>
    %64 = arith.addf %61, %63 : vector<16x128xf32>
    %65 = arith.negf %64 : vector<16x128xf32>
    %66 = math.exp %65 : vector<16x128xf32>
    %cst_21 = arith.constant 1.000000e+00 : f32
    %67 = vector.broadcast %cst_21 : f32 to vector<16x128xf32>
    %68 = arith.addf %67, %66 : vector<16x128xf32>
    %69 = arith.divf %67, %68 : vector<16x128xf32>
    %70 = vector.extract_strided_slice %69 {offsets = [0, 0], sizes = [16, 32], strides = [1, 1]} : vector<16x128xf32> to vector<16x32xf32>
    %71 = vector.extract_strided_slice %69 {offsets = [0, 32], sizes = [16, 32], strides = [1, 1]} : vector<16x128xf32> to vector<16x32xf32>
    %72 = vector.extract_strided_slice %69 {offsets = [0, 64], sizes = [16, 32], strides = [1, 1]} : vector<16x128xf32> to vector<16x32xf32>
    %cst_22 = arith.constant 2.000000e+00 : f32
    %73 = vector.broadcast %cst_22 : f32 to vector<16x32xf32>
    %74 = arith.mulf %73, %72 : vector<16x32xf32>
    %cst_23 = arith.constant 1.000000e+00 : f32
    %75 = vector.broadcast %cst_23 : f32 to vector<16x32xf32>
    %76 = arith.subf %74, %75 : vector<16x32xf32>
    %77 = vector.extract_strided_slice %69 {offsets = [0, 96], sizes = [16, 32], strides = [1, 1]} : vector<16x128xf32> to vector<16x32xf32>
    %78 = arith.mulf %71, %35 : vector<16x32xf32>
    %79 = arith.mulf %70, %76 : vector<16x32xf32>
    %80 = arith.addf %78, %79 : vector<16x32xf32>
    %81 = math.tanh %80 : vector<16x32xf32>
    %82 = arith.mulf %77, %81 : vector<16x32xf32>
    %83 = tpu.concatenate %82, %60 in 1 : vector<16x32xf32>, vector<16x32xf32> -> vector<16x64xf32>
    %84 = arith.truncf %83 : vector<16x64xf32> to vector<16x64xbf16>
    %cst_24 = arith.constant dense<0.000000e+00> : vector<16x128xf32>
    %85 = tpu.matmul %84, %13, %cst_24 {dimension_numbers = #tpu.dot_dimension_numbers<[1], [0], [0], [1], [0, 0, 1, 1], [], []>} : vector<16x64xbf16>, vector<64x128xbf16>, vector<16x128xf32> -> vector<16x128xf32>
    %86 = vector.broadcast %14 : vector<1x128xf32> to vector<16x128xf32>
    %87 = arith.addf %85, %86 : vector<16x128xf32>
    %88 = arith.negf %87 : vector<16x128xf32>
    %89 = math.exp %88 : vector<16x128xf32>
    %cst_25 = arith.constant 1.000000e+00 : f32
    %90 = vector.broadcast %cst_25 : f32 to vector<16x128xf32>
    %91 = arith.addf %90, %89 : vector<16x128xf32>
    %92 = arith.divf %90, %91 : vector<16x128xf32>
    %93 = vector.extract_strided_slice %92 {offsets = [0, 0], sizes = [16, 32], strides = [1, 1]} : vector<16x128xf32> to vector<16x32xf32>
    %94 = vector.extract_strided_slice %92 {offsets = [0, 32], sizes = [16, 32], strides = [1, 1]} : vector<16x128xf32> to vector<16x32xf32>
    %95 = vector.extract_strided_slice %92 {offsets = [0, 64], sizes = [16, 32], strides = [1, 1]} : vector<16x128xf32> to vector<16x32xf32>
    %cst_26 = arith.constant 2.000000e+00 : f32
    %96 = vector.broadcast %cst_26 : f32 to vector<16x32xf32>
    %97 = arith.mulf %96, %95 : vector<16x32xf32>
    %cst_27 = arith.constant 1.000000e+00 : f32
    %98 = vector.broadcast %cst_27 : f32 to vector<16x32xf32>
    %99 = arith.subf %97, %98 : vector<16x32xf32>
    %100 = vector.extract_strided_slice %92 {offsets = [0, 96], sizes = [16, 32], strides = [1, 1]} : vector<16x128xf32> to vector<16x32xf32>
    %101 = arith.mulf %94, %58 : vector<16x32xf32>
    %102 = arith.mulf %93, %99 : vector<16x32xf32>
    %103 = arith.addf %101, %102 : vector<16x32xf32>
    %104 = math.tanh %103 : vector<16x32xf32>
    %105 = arith.mulf %100, %104 : vector<16x32xf32>
    %106 = vector.extract_strided_slice %11 {offsets = [32, 0], sizes = [16, 128], strides = [1, 1]} : vector<128x128xf32> to vector<16x128xf32>
    %107 = arith.truncf %82 : vector<16x32xf32> to vector<16x32xbf16>
    %cst_28 = arith.constant dense<0.000000e+00> : vector<16x128xf32>
    %108 = tpu.matmul %107, %12, %cst_28 {dimension_numbers = #tpu.dot_dimension_numbers<[1], [0], [0], [1], [0, 0, 1, 1], [], []>} : vector<16x32xbf16>, vector<32x128xbf16>, vector<16x128xf32> -> vector<16x128xf32>
    %109 = arith.addf %106, %108 : vector<16x128xf32>
    %110 = arith.negf %109 : vector<16x128xf32>
    %111 = math.exp %110 : vector<16x128xf32>
    %cst_29 = arith.constant 1.000000e+00 : f32
    %112 = vector.broadcast %cst_29 : f32 to vector<16x128xf32>
    %113 = arith.addf %112, %111 : vector<16x128xf32>
    %114 = arith.divf %112, %113 : vector<16x128xf32>
    %115 = vector.extract_strided_slice %114 {offsets = [0, 0], sizes = [16, 32], strides = [1, 1]} : vector<16x128xf32> to vector<16x32xf32>
    %116 = vector.extract_strided_slice %114 {offsets = [0, 32], sizes = [16, 32], strides = [1, 1]} : vector<16x128xf32> to vector<16x32xf32>
    %117 = vector.extract_strided_slice %114 {offsets = [0, 64], sizes = [16, 32], strides = [1, 1]} : vector<16x128xf32> to vector<16x32xf32>
    %cst_30 = arith.constant 2.000000e+00 : f32
    %118 = vector.broadcast %cst_30 : f32 to vector<16x32xf32>
    %119 = arith.mulf %118, %117 : vector<16x32xf32>
    %cst_31 = arith.constant 1.000000e+00 : f32
    %120 = vector.broadcast %cst_31 : f32 to vector<16x32xf32>
    %121 = arith.subf %119, %120 : vector<16x32xf32>
    %122 = vector.extract_strided_slice %114 {offsets = [0, 96], sizes = [16, 32], strides = [1, 1]} : vector<16x128xf32> to vector<16x32xf32>
    %123 = arith.mulf %116, %80 : vector<16x32xf32>
    %124 = arith.mulf %115, %121 : vector<16x32xf32>
    %125 = arith.addf %123, %124 : vector<16x32xf32>
    %126 = math.tanh %125 : vector<16x32xf32>
    %127 = arith.mulf %122, %126 : vector<16x32xf32>
    %128 = tpu.concatenate %127, %105 in 1 : vector<16x32xf32>, vector<16x32xf32> -> vector<16x64xf32>
    %129 = arith.truncf %128 : vector<16x64xf32> to vector<16x64xbf16>
    %cst_32 = arith.constant dense<0.000000e+00> : vector<16x128xf32>
    %130 = tpu.matmul %129, %13, %cst_32 {dimension_numbers = #tpu.dot_dimension_numbers<[1], [0], [0], [1], [0, 0, 1, 1], [], []>} : vector<16x64xbf16>, vector<64x128xbf16>, vector<16x128xf32> -> vector<16x128xf32>
    %131 = vector.broadcast %14 : vector<1x128xf32> to vector<16x128xf32>
    %132 = arith.addf %130, %131 : vector<16x128xf32>
    %133 = arith.negf %132 : vector<16x128xf32>
    %134 = math.exp %133 : vector<16x128xf32>
    %cst_33 = arith.constant 1.000000e+00 : f32
    %135 = vector.broadcast %cst_33 : f32 to vector<16x128xf32>
    %136 = arith.addf %135, %134 : vector<16x128xf32>
    %137 = arith.divf %135, %136 : vector<16x128xf32>
    %138 = vector.extract_strided_slice %137 {offsets = [0, 0], sizes = [16, 32], strides = [1, 1]} : vector<16x128xf32> to vector<16x32xf32>
    %139 = vector.extract_strided_slice %137 {offsets = [0, 32], sizes = [16, 32], strides = [1, 1]} : vector<16x128xf32> to vector<16x32xf32>
    %140 = vector.extract_strided_slice %137 {offsets = [0, 64], sizes = [16, 32], strides = [1, 1]} : vector<16x128xf32> to vector<16x32xf32>
    %cst_34 = arith.constant 2.000000e+00 : f32
    %141 = vector.broadcast %cst_34 : f32 to vector<16x32xf32>
    %142 = arith.mulf %141, %140 : vector<16x32xf32>
    %cst_35 = arith.constant 1.000000e+00 : f32
    %143 = vector.broadcast %cst_35 : f32 to vector<16x32xf32>
    %144 = arith.subf %142, %143 : vector<16x32xf32>
    %145 = vector.extract_strided_slice %137 {offsets = [0, 96], sizes = [16, 32], strides = [1, 1]} : vector<16x128xf32> to vector<16x32xf32>
    %146 = arith.mulf %139, %103 : vector<16x32xf32>
    %147 = arith.mulf %138, %144 : vector<16x32xf32>
    %148 = arith.addf %146, %147 : vector<16x32xf32>
    %149 = math.tanh %148 : vector<16x32xf32>
    %150 = arith.mulf %145, %149 : vector<16x32xf32>
    %151 = vector.extract_strided_slice %11 {offsets = [48, 0], sizes = [16, 128], strides = [1, 1]} : vector<128x128xf32> to vector<16x128xf32>
    %152 = arith.truncf %127 : vector<16x32xf32> to vector<16x32xbf16>
    %cst_36 = arith.constant dense<0.000000e+00> : vector<16x128xf32>
    %153 = tpu.matmul %152, %12, %cst_36 {dimension_numbers = #tpu.dot_dimension_numbers<[1], [0], [0], [1], [0, 0, 1, 1], [], []>} : vector<16x32xbf16>, vector<32x128xbf16>, vector<16x128xf32> -> vector<16x128xf32>
    %154 = arith.addf %151, %153 : vector<16x128xf32>
    %155 = arith.negf %154 : vector<16x128xf32>
    %156 = math.exp %155 : vector<16x128xf32>
    %cst_37 = arith.constant 1.000000e+00 : f32
    %157 = vector.broadcast %cst_37 : f32 to vector<16x128xf32>
    %158 = arith.addf %157, %156 : vector<16x128xf32>
    %159 = arith.divf %157, %158 : vector<16x128xf32>
    %160 = vector.extract_strided_slice %159 {offsets = [0, 0], sizes = [16, 32], strides = [1, 1]} : vector<16x128xf32> to vector<16x32xf32>
    %161 = vector.extract_strided_slice %159 {offsets = [0, 32], sizes = [16, 32], strides = [1, 1]} : vector<16x128xf32> to vector<16x32xf32>
    %162 = vector.extract_strided_slice %159 {offsets = [0, 64], sizes = [16, 32], strides = [1, 1]} : vector<16x128xf32> to vector<16x32xf32>
    %cst_38 = arith.constant 2.000000e+00 : f32
    %163 = vector.broadcast %cst_38 : f32 to vector<16x32xf32>
    %164 = arith.mulf %163, %162 : vector<16x32xf32>
    %cst_39 = arith.constant 1.000000e+00 : f32
    %165 = vector.broadcast %cst_39 : f32 to vector<16x32xf32>
    %166 = arith.subf %164, %165 : vector<16x32xf32>
    %167 = vector.extract_strided_slice %159 {offsets = [0, 96], sizes = [16, 32], strides = [1, 1]} : vector<16x128xf32> to vector<16x32xf32>
    %168 = arith.mulf %161, %125 : vector<16x32xf32>
    %169 = arith.mulf %160, %166 : vector<16x32xf32>
    %170 = arith.addf %168, %169 : vector<16x32xf32>
    %171 = math.tanh %170 : vector<16x32xf32>
    %172 = arith.mulf %167, %171 : vector<16x32xf32>
    %173 = tpu.concatenate %172, %150 in 1 : vector<16x32xf32>, vector<16x32xf32> -> vector<16x64xf32>
    %174 = arith.truncf %173 : vector<16x64xf32> to vector<16x64xbf16>
    %cst_40 = arith.constant dense<0.000000e+00> : vector<16x128xf32>
    %175 = tpu.matmul %174, %13, %cst_40 {dimension_numbers = #tpu.dot_dimension_numbers<[1], [0], [0], [1], [0, 0, 1, 1], [], []>} : vector<16x64xbf16>, vector<64x128xbf16>, vector<16x128xf32> -> vector<16x128xf32>
    %176 = vector.broadcast %14 : vector<1x128xf32> to vector<16x128xf32>
    %177 = arith.addf %175, %176 : vector<16x128xf32>
    %178 = arith.negf %177 : vector<16x128xf32>
    %179 = math.exp %178 : vector<16x128xf32>
    %cst_41 = arith.constant 1.000000e+00 : f32
    %180 = vector.broadcast %cst_41 : f32 to vector<16x128xf32>
    %181 = arith.addf %180, %179 : vector<16x128xf32>
    %182 = arith.divf %180, %181 : vector<16x128xf32>
    %183 = vector.extract_strided_slice %182 {offsets = [0, 0], sizes = [16, 32], strides = [1, 1]} : vector<16x128xf32> to vector<16x32xf32>
    %184 = vector.extract_strided_slice %182 {offsets = [0, 32], sizes = [16, 32], strides = [1, 1]} : vector<16x128xf32> to vector<16x32xf32>
    %185 = vector.extract_strided_slice %182 {offsets = [0, 64], sizes = [16, 32], strides = [1, 1]} : vector<16x128xf32> to vector<16x32xf32>
    %cst_42 = arith.constant 2.000000e+00 : f32
    %186 = vector.broadcast %cst_42 : f32 to vector<16x32xf32>
    %187 = arith.mulf %186, %185 : vector<16x32xf32>
    %cst_43 = arith.constant 1.000000e+00 : f32
    %188 = vector.broadcast %cst_43 : f32 to vector<16x32xf32>
    %189 = arith.subf %187, %188 : vector<16x32xf32>
    %190 = vector.extract_strided_slice %182 {offsets = [0, 96], sizes = [16, 32], strides = [1, 1]} : vector<16x128xf32> to vector<16x32xf32>
    %191 = arith.mulf %184, %148 : vector<16x32xf32>
    %192 = arith.mulf %183, %189 : vector<16x32xf32>
    %193 = arith.addf %191, %192 : vector<16x32xf32>
    %194 = math.tanh %193 : vector<16x32xf32>
    %195 = arith.mulf %190, %194 : vector<16x32xf32>
    %196 = vector.extract_strided_slice %11 {offsets = [64, 0], sizes = [16, 128], strides = [1, 1]} : vector<128x128xf32> to vector<16x128xf32>
    %197 = arith.truncf %172 : vector<16x32xf32> to vector<16x32xbf16>
    %cst_44 = arith.constant dense<0.000000e+00> : vector<16x128xf32>
    %198 = tpu.matmul %197, %12, %cst_44 {dimension_numbers = #tpu.dot_dimension_numbers<[1], [0], [0], [1], [0, 0, 1, 1], [], []>} : vector<16x32xbf16>, vector<32x128xbf16>, vector<16x128xf32> -> vector<16x128xf32>
    %199 = arith.addf %196, %198 : vector<16x128xf32>
    %200 = arith.negf %199 : vector<16x128xf32>
    %201 = math.exp %200 : vector<16x128xf32>
    %cst_45 = arith.constant 1.000000e+00 : f32
    %202 = vector.broadcast %cst_45 : f32 to vector<16x128xf32>
    %203 = arith.addf %202, %201 : vector<16x128xf32>
    %204 = arith.divf %202, %203 : vector<16x128xf32>
    %205 = vector.extract_strided_slice %204 {offsets = [0, 0], sizes = [16, 32], strides = [1, 1]} : vector<16x128xf32> to vector<16x32xf32>
    %206 = vector.extract_strided_slice %204 {offsets = [0, 32], sizes = [16, 32], strides = [1, 1]} : vector<16x128xf32> to vector<16x32xf32>
    %207 = vector.extract_strided_slice %204 {offsets = [0, 64], sizes = [16, 32], strides = [1, 1]} : vector<16x128xf32> to vector<16x32xf32>
    %cst_46 = arith.constant 2.000000e+00 : f32
    %208 = vector.broadcast %cst_46 : f32 to vector<16x32xf32>
    %209 = arith.mulf %208, %207 : vector<16x32xf32>
    %cst_47 = arith.constant 1.000000e+00 : f32
    %210 = vector.broadcast %cst_47 : f32 to vector<16x32xf32>
    %211 = arith.subf %209, %210 : vector<16x32xf32>
    %212 = vector.extract_strided_slice %204 {offsets = [0, 96], sizes = [16, 32], strides = [1, 1]} : vector<16x128xf32> to vector<16x32xf32>
    %213 = arith.mulf %206, %170 : vector<16x32xf32>
    %214 = arith.mulf %205, %211 : vector<16x32xf32>
    %215 = arith.addf %213, %214 : vector<16x32xf32>
    %216 = math.tanh %215 : vector<16x32xf32>
    %217 = arith.mulf %212, %216 : vector<16x32xf32>
    %218 = tpu.concatenate %217, %195 in 1 : vector<16x32xf32>, vector<16x32xf32> -> vector<16x64xf32>
    %219 = arith.truncf %218 : vector<16x64xf32> to vector<16x64xbf16>
    %cst_48 = arith.constant dense<0.000000e+00> : vector<16x128xf32>
    %220 = tpu.matmul %219, %13, %cst_48 {dimension_numbers = #tpu.dot_dimension_numbers<[1], [0], [0], [1], [0, 0, 1, 1], [], []>} : vector<16x64xbf16>, vector<64x128xbf16>, vector<16x128xf32> -> vector<16x128xf32>
    %221 = vector.broadcast %14 : vector<1x128xf32> to vector<16x128xf32>
    %222 = arith.addf %220, %221 : vector<16x128xf32>
    %223 = arith.negf %222 : vector<16x128xf32>
    %224 = math.exp %223 : vector<16x128xf32>
    %cst_49 = arith.constant 1.000000e+00 : f32
    %225 = vector.broadcast %cst_49 : f32 to vector<16x128xf32>
    %226 = arith.addf %225, %224 : vector<16x128xf32>
    %227 = arith.divf %225, %226 : vector<16x128xf32>
    %228 = vector.extract_strided_slice %227 {offsets = [0, 0], sizes = [16, 32], strides = [1, 1]} : vector<16x128xf32> to vector<16x32xf32>
    %229 = vector.extract_strided_slice %227 {offsets = [0, 32], sizes = [16, 32], strides = [1, 1]} : vector<16x128xf32> to vector<16x32xf32>
    %230 = vector.extract_strided_slice %227 {offsets = [0, 64], sizes = [16, 32], strides = [1, 1]} : vector<16x128xf32> to vector<16x32xf32>
    %cst_50 = arith.constant 2.000000e+00 : f32
    %231 = vector.broadcast %cst_50 : f32 to vector<16x32xf32>
    %232 = arith.mulf %231, %230 : vector<16x32xf32>
    %cst_51 = arith.constant 1.000000e+00 : f32
    %233 = vector.broadcast %cst_51 : f32 to vector<16x32xf32>
    %234 = arith.subf %232, %233 : vector<16x32xf32>
    %235 = vector.extract_strided_slice %227 {offsets = [0, 96], sizes = [16, 32], strides = [1, 1]} : vector<16x128xf32> to vector<16x32xf32>
    %236 = arith.mulf %229, %193 : vector<16x32xf32>
    %237 = arith.mulf %228, %234 : vector<16x32xf32>
    %238 = arith.addf %236, %237 : vector<16x32xf32>
    %239 = math.tanh %238 : vector<16x32xf32>
    %240 = arith.mulf %235, %239 : vector<16x32xf32>
    %241 = vector.extract_strided_slice %11 {offsets = [80, 0], sizes = [16, 128], strides = [1, 1]} : vector<128x128xf32> to vector<16x128xf32>
    %242 = arith.truncf %217 : vector<16x32xf32> to vector<16x32xbf16>
    %cst_52 = arith.constant dense<0.000000e+00> : vector<16x128xf32>
    %243 = tpu.matmul %242, %12, %cst_52 {dimension_numbers = #tpu.dot_dimension_numbers<[1], [0], [0], [1], [0, 0, 1, 1], [], []>} : vector<16x32xbf16>, vector<32x128xbf16>, vector<16x128xf32> -> vector<16x128xf32>
    %244 = arith.addf %241, %243 : vector<16x128xf32>
    %245 = arith.negf %244 : vector<16x128xf32>
    %246 = math.exp %245 : vector<16x128xf32>
    %cst_53 = arith.constant 1.000000e+00 : f32
    %247 = vector.broadcast %cst_53 : f32 to vector<16x128xf32>
    %248 = arith.addf %247, %246 : vector<16x128xf32>
    %249 = arith.divf %247, %248 : vector<16x128xf32>
    %250 = vector.extract_strided_slice %249 {offsets = [0, 0], sizes = [16, 32], strides = [1, 1]} : vector<16x128xf32> to vector<16x32xf32>
    %251 = vector.extract_strided_slice %249 {offsets = [0, 32], sizes = [16, 32], strides = [1, 1]} : vector<16x128xf32> to vector<16x32xf32>
    %252 = vector.extract_strided_slice %249 {offsets = [0, 64], sizes = [16, 32], strides = [1, 1]} : vector<16x128xf32> to vector<16x32xf32>
    %cst_54 = arith.constant 2.000000e+00 : f32
    %253 = vector.broadcast %cst_54 : f32 to vector<16x32xf32>
    %254 = arith.mulf %253, %252 : vector<16x32xf32>
    %cst_55 = arith.constant 1.000000e+00 : f32
    %255 = vector.broadcast %cst_55 : f32 to vector<16x32xf32>
    %256 = arith.subf %254, %255 : vector<16x32xf32>
    %257 = vector.extract_strided_slice %249 {offsets = [0, 96], sizes = [16, 32], strides = [1, 1]} : vector<16x128xf32> to vector<16x32xf32>
    %258 = arith.mulf %251, %215 : vector<16x32xf32>
    %259 = arith.mulf %250, %256 : vector<16x32xf32>
    %260 = arith.addf %258, %259 : vector<16x32xf32>
    %261 = math.tanh %260 : vector<16x32xf32>
    %262 = arith.mulf %257, %261 : vector<16x32xf32>
    %263 = tpu.concatenate %262, %240 in 1 : vector<16x32xf32>, vector<16x32xf32> -> vector<16x64xf32>
    %264 = arith.truncf %263 : vector<16x64xf32> to vector<16x64xbf16>
    %cst_56 = arith.constant dense<0.000000e+00> : vector<16x128xf32>
    %265 = tpu.matmul %264, %13, %cst_56 {dimension_numbers = #tpu.dot_dimension_numbers<[1], [0], [0], [1], [0, 0, 1, 1], [], []>} : vector<16x64xbf16>, vector<64x128xbf16>, vector<16x128xf32> -> vector<16x128xf32>
    %266 = vector.broadcast %14 : vector<1x128xf32> to vector<16x128xf32>
    %267 = arith.addf %265, %266 : vector<16x128xf32>
    %268 = arith.negf %267 : vector<16x128xf32>
    %269 = math.exp %268 : vector<16x128xf32>
    %cst_57 = arith.constant 1.000000e+00 : f32
    %270 = vector.broadcast %cst_57 : f32 to vector<16x128xf32>
    %271 = arith.addf %270, %269 : vector<16x128xf32>
    %272 = arith.divf %270, %271 : vector<16x128xf32>
    %273 = vector.extract_strided_slice %272 {offsets = [0, 0], sizes = [16, 32], strides = [1, 1]} : vector<16x128xf32> to vector<16x32xf32>
    %274 = vector.extract_strided_slice %272 {offsets = [0, 32], sizes = [16, 32], strides = [1, 1]} : vector<16x128xf32> to vector<16x32xf32>
    %275 = vector.extract_strided_slice %272 {offsets = [0, 64], sizes = [16, 32], strides = [1, 1]} : vector<16x128xf32> to vector<16x32xf32>
    %cst_58 = arith.constant 2.000000e+00 : f32
    %276 = vector.broadcast %cst_58 : f32 to vector<16x32xf32>
    %277 = arith.mulf %276, %275 : vector<16x32xf32>
    %cst_59 = arith.constant 1.000000e+00 : f32
    %278 = vector.broadcast %cst_59 : f32 to vector<16x32xf32>
    %279 = arith.subf %277, %278 : vector<16x32xf32>
    %280 = vector.extract_strided_slice %272 {offsets = [0, 96], sizes = [16, 32], strides = [1, 1]} : vector<16x128xf32> to vector<16x32xf32>
    %281 = arith.mulf %274, %238 : vector<16x32xf32>
    %282 = arith.mulf %273, %279 : vector<16x32xf32>
    %283 = arith.addf %281, %282 : vector<16x32xf32>
    %284 = math.tanh %283 : vector<16x32xf32>
    %285 = arith.mulf %280, %284 : vector<16x32xf32>
    %286 = vector.extract_strided_slice %11 {offsets = [96, 0], sizes = [16, 128], strides = [1, 1]} : vector<128x128xf32> to vector<16x128xf32>
    %287 = arith.truncf %262 : vector<16x32xf32> to vector<16x32xbf16>
    %cst_60 = arith.constant dense<0.000000e+00> : vector<16x128xf32>
    %288 = tpu.matmul %287, %12, %cst_60 {dimension_numbers = #tpu.dot_dimension_numbers<[1], [0], [0], [1], [0, 0, 1, 1], [], []>} : vector<16x32xbf16>, vector<32x128xbf16>, vector<16x128xf32> -> vector<16x128xf32>
    %289 = arith.addf %286, %288 : vector<16x128xf32>
    %290 = arith.negf %289 : vector<16x128xf32>
    %291 = math.exp %290 : vector<16x128xf32>
    %cst_61 = arith.constant 1.000000e+00 : f32
    %292 = vector.broadcast %cst_61 : f32 to vector<16x128xf32>
    %293 = arith.addf %292, %291 : vector<16x128xf32>
    %294 = arith.divf %292, %293 : vector<16x128xf32>
    %295 = vector.extract_strided_slice %294 {offsets = [0, 0], sizes = [16, 32], strides = [1, 1]} : vector<16x128xf32> to vector<16x32xf32>
    %296 = vector.extract_strided_slice %294 {offsets = [0, 32], sizes = [16, 32], strides = [1, 1]} : vector<16x128xf32> to vector<16x32xf32>
    %297 = vector.extract_strided_slice %294 {offsets = [0, 64], sizes = [16, 32], strides = [1, 1]} : vector<16x128xf32> to vector<16x32xf32>
    %cst_62 = arith.constant 2.000000e+00 : f32
    %298 = vector.broadcast %cst_62 : f32 to vector<16x32xf32>
    %299 = arith.mulf %298, %297 : vector<16x32xf32>
    %cst_63 = arith.constant 1.000000e+00 : f32
    %300 = vector.broadcast %cst_63 : f32 to vector<16x32xf32>
    %301 = arith.subf %299, %300 : vector<16x32xf32>
    %302 = vector.extract_strided_slice %294 {offsets = [0, 96], sizes = [16, 32], strides = [1, 1]} : vector<16x128xf32> to vector<16x32xf32>
    %303 = arith.mulf %296, %260 : vector<16x32xf32>
    %304 = arith.mulf %295, %301 : vector<16x32xf32>
    %305 = arith.addf %303, %304 : vector<16x32xf32>
    %306 = math.tanh %305 : vector<16x32xf32>
    %307 = arith.mulf %302, %306 : vector<16x32xf32>
    %308 = tpu.concatenate %307, %285 in 1 : vector<16x32xf32>, vector<16x32xf32> -> vector<16x64xf32>
    %309 = arith.truncf %308 : vector<16x64xf32> to vector<16x64xbf16>
    %cst_64 = arith.constant dense<0.000000e+00> : vector<16x128xf32>
    %310 = tpu.matmul %309, %13, %cst_64 {dimension_numbers = #tpu.dot_dimension_numbers<[1], [0], [0], [1], [0, 0, 1, 1], [], []>} : vector<16x64xbf16>, vector<64x128xbf16>, vector<16x128xf32> -> vector<16x128xf32>
    %311 = vector.broadcast %14 : vector<1x128xf32> to vector<16x128xf32>
    %312 = arith.addf %310, %311 : vector<16x128xf32>
    %313 = arith.negf %312 : vector<16x128xf32>
    %314 = math.exp %313 : vector<16x128xf32>
    %cst_65 = arith.constant 1.000000e+00 : f32
    %315 = vector.broadcast %cst_65 : f32 to vector<16x128xf32>
    %316 = arith.addf %315, %314 : vector<16x128xf32>
    %317 = arith.divf %315, %316 : vector<16x128xf32>
    %318 = vector.extract_strided_slice %317 {offsets = [0, 0], sizes = [16, 32], strides = [1, 1]} : vector<16x128xf32> to vector<16x32xf32>
    %319 = vector.extract_strided_slice %317 {offsets = [0, 32], sizes = [16, 32], strides = [1, 1]} : vector<16x128xf32> to vector<16x32xf32>
    %320 = vector.extract_strided_slice %317 {offsets = [0, 64], sizes = [16, 32], strides = [1, 1]} : vector<16x128xf32> to vector<16x32xf32>
    %cst_66 = arith.constant 2.000000e+00 : f32
    %321 = vector.broadcast %cst_66 : f32 to vector<16x32xf32>
    %322 = arith.mulf %321, %320 : vector<16x32xf32>
    %cst_67 = arith.constant 1.000000e+00 : f32
    %323 = vector.broadcast %cst_67 : f32 to vector<16x32xf32>
    %324 = arith.subf %322, %323 : vector<16x32xf32>
    %325 = vector.extract_strided_slice %317 {offsets = [0, 96], sizes = [16, 32], strides = [1, 1]} : vector<16x128xf32> to vector<16x32xf32>
    %326 = arith.mulf %319, %283 : vector<16x32xf32>
    %327 = arith.mulf %318, %324 : vector<16x32xf32>
    %328 = arith.addf %326, %327 : vector<16x32xf32>
    %329 = math.tanh %328 : vector<16x32xf32>
    %330 = arith.mulf %325, %329 : vector<16x32xf32>
    %331 = vector.extract_strided_slice %11 {offsets = [112, 0], sizes = [16, 128], strides = [1, 1]} : vector<128x128xf32> to vector<16x128xf32>
    %332 = arith.truncf %307 : vector<16x32xf32> to vector<16x32xbf16>
    %cst_68 = arith.constant dense<0.000000e+00> : vector<16x128xf32>
    %333 = tpu.matmul %332, %12, %cst_68 {dimension_numbers = #tpu.dot_dimension_numbers<[1], [0], [0], [1], [0, 0, 1, 1], [], []>} : vector<16x32xbf16>, vector<32x128xbf16>, vector<16x128xf32> -> vector<16x128xf32>
    %334 = arith.addf %331, %333 : vector<16x128xf32>
    %335 = arith.negf %334 : vector<16x128xf32>
    %336 = math.exp %335 : vector<16x128xf32>
    %cst_69 = arith.constant 1.000000e+00 : f32
    %337 = vector.broadcast %cst_69 : f32 to vector<16x128xf32>
    %338 = arith.addf %337, %336 : vector<16x128xf32>
    %339 = arith.divf %337, %338 : vector<16x128xf32>
    %340 = vector.extract_strided_slice %339 {offsets = [0, 0], sizes = [16, 32], strides = [1, 1]} : vector<16x128xf32> to vector<16x32xf32>
    %341 = vector.extract_strided_slice %339 {offsets = [0, 32], sizes = [16, 32], strides = [1, 1]} : vector<16x128xf32> to vector<16x32xf32>
    %342 = vector.extract_strided_slice %339 {offsets = [0, 64], sizes = [16, 32], strides = [1, 1]} : vector<16x128xf32> to vector<16x32xf32>
    %cst_70 = arith.constant 2.000000e+00 : f32
    %343 = vector.broadcast %cst_70 : f32 to vector<16x32xf32>
    %344 = arith.mulf %343, %342 : vector<16x32xf32>
    %cst_71 = arith.constant 1.000000e+00 : f32
    %345 = vector.broadcast %cst_71 : f32 to vector<16x32xf32>
    %346 = arith.subf %344, %345 : vector<16x32xf32>
    %347 = vector.extract_strided_slice %339 {offsets = [0, 96], sizes = [16, 32], strides = [1, 1]} : vector<16x128xf32> to vector<16x32xf32>
    %348 = arith.mulf %341, %305 : vector<16x32xf32>
    %349 = arith.mulf %340, %346 : vector<16x32xf32>
    %350 = arith.addf %348, %349 : vector<16x32xf32>
    %351 = math.tanh %350 : vector<16x32xf32>
    %352 = arith.mulf %347, %351 : vector<16x32xf32>
    %353 = tpu.concatenate %352, %330 in 1 : vector<16x32xf32>, vector<16x32xf32> -> vector<16x64xf32>
    %354 = arith.truncf %353 : vector<16x64xf32> to vector<16x64xbf16>
    %cst_72 = arith.constant dense<0.000000e+00> : vector<16x128xf32>
    %355 = tpu.matmul %354, %13, %cst_72 {dimension_numbers = #tpu.dot_dimension_numbers<[1], [0], [0], [1], [0, 0, 1, 1], [], []>} : vector<16x64xbf16>, vector<64x128xbf16>, vector<16x128xf32> -> vector<16x128xf32>
    %356 = vector.broadcast %14 : vector<1x128xf32> to vector<16x128xf32>
    %357 = arith.addf %355, %356 : vector<16x128xf32>
    %358 = arith.negf %357 : vector<16x128xf32>
    %359 = math.exp %358 : vector<16x128xf32>
    %cst_73 = arith.constant 1.000000e+00 : f32
    %360 = vector.broadcast %cst_73 : f32 to vector<16x128xf32>
    %361 = arith.addf %360, %359 : vector<16x128xf32>
    %362 = arith.divf %360, %361 : vector<16x128xf32>
    %363 = vector.extract_strided_slice %362 {offsets = [0, 0], sizes = [16, 32], strides = [1, 1]} : vector<16x128xf32> to vector<16x32xf32>
    %364 = vector.extract_strided_slice %362 {offsets = [0, 32], sizes = [16, 32], strides = [1, 1]} : vector<16x128xf32> to vector<16x32xf32>
    %365 = vector.extract_strided_slice %362 {offsets = [0, 64], sizes = [16, 32], strides = [1, 1]} : vector<16x128xf32> to vector<16x32xf32>
    %cst_74 = arith.constant 2.000000e+00 : f32
    %366 = vector.broadcast %cst_74 : f32 to vector<16x32xf32>
    %367 = arith.mulf %366, %365 : vector<16x32xf32>
    %cst_75 = arith.constant 1.000000e+00 : f32
    %368 = vector.broadcast %cst_75 : f32 to vector<16x32xf32>
    %369 = arith.subf %367, %368 : vector<16x32xf32>
    %370 = vector.extract_strided_slice %362 {offsets = [0, 96], sizes = [16, 32], strides = [1, 1]} : vector<16x128xf32> to vector<16x32xf32>
    %371 = arith.mulf %364, %328 : vector<16x32xf32>
    %372 = arith.mulf %363, %369 : vector<16x32xf32>
    %373 = arith.addf %371, %372 : vector<16x32xf32>
    %374 = math.tanh %373 : vector<16x32xf32>
    %375 = arith.mulf %370, %374 : vector<16x32xf32>
    %376 = arith.truncf %375 : vector<16x32xf32> to vector<16x32xbf16>
    %c0_76 = arith.constant 0 : index
    %c0_77 = arith.constant 0 : index
    %377 = vector.load %arg7[%c0_76, %c0_77] : memref<32x1xbf16, #tpu.memory_space<vmem>>, vector<32x1xbf16>
    %cst_78 = arith.constant dense<0.000000e+00> : vector<16x1xf32>
    %378 = tpu.matmul %376, %377, %cst_78 {dimension_numbers = #tpu.dot_dimension_numbers<[1], [0], [0], [1], [0, 0, 1, 1], [], []>} : vector<16x32xbf16>, vector<32x1xbf16>, vector<16x1xf32> -> vector<16x1xf32>
    %c0_79 = arith.constant 0 : index
    %c0_80 = arith.constant 0 : index
    %379 = vector.load %arg8[%c0_79, %c0_80] : memref<1x1xf32, #tpu.memory_space<vmem>>, vector<1x1xf32>
    %380 = vector.broadcast %379 : vector<1x1xf32> to vector<16x1xf32>
    %381 = arith.addf %378, %380 : vector<16x1xf32>
    %382 = arith.negf %381 : vector<16x1xf32>
    %383 = math.exp %382 : vector<16x1xf32>
    %cst_81 = arith.constant 1.000000e+00 : f32
    %384 = vector.broadcast %cst_81 : f32 to vector<16x1xf32>
    %385 = arith.addf %384, %383 : vector<16x1xf32>
    %386 = arith.divf %384, %385 : vector<16x1xf32>
    %c0_82 = arith.constant 0 : index
    %c0_83 = arith.constant 0 : index
    %387 = vector.load %arg9[%c0_82, %c0_83] : memref<16x1xf32, #tpu.memory_space<vmem>>, vector<16x1xf32>
    tpu.vector_store %arg9[%c0_82, %c0_83], %386 {strides = array<i32>} : memref<16x1xf32, #tpu.memory_space<vmem>>, vector<16x1xf32>,
    return
  }
  func.func @transform_0(%arg0: i32) -> (i32, i32) {
    %c0_i32 = arith.constant 0 : i32
    %c0_i32_0 = arith.constant 0 : i32
    %c0_i32_1 = arith.constant 0 : i32
    return %c0_i32, %c0_i32_0 : i32, i32
  }
  func.func @transform_1(%arg0: i32) -> (i32, i32) {
    %c0_i32 = arith.constant 0 : i32
    %c0_i32_0 = arith.constant 0 : i32
    %c0_i32_1 = arith.constant 0 : i32
    return %c0_i32, %c0_i32_0 : i32, i32
  }
  func.func @transform_2(%arg0: i32) -> (i32, i32) {
    %c0_i32 = arith.constant 0 : i32
    %c0_i32_0 = arith.constant 0 : i32
    %c0_i32_1 = arith.constant 0 : i32
    return %c0_i32, %c0_i32_0 : i32, i32
  }
  func.func @transform_3(%arg0: i32) -> (i32, i32) {
    %c0_i32 = arith.constant 0 : i32
    %c0_i32_0 = arith.constant 0 : i32
    %c0_i32_1 = arith.constant 0 : i32
    return %c0_i32, %c0_i32_0 : i32, i32
  }
  func.func @transform_4(%arg0: i32) -> (i32, i32) {
    %c0_i32 = arith.constant 0 : i32
    %c0_i32_0 = arith.constant 0 : i32
    %c0_i32_1 = arith.constant 0 : i32
    return %c0_i32, %c0_i32_0 : i32, i32
  }
  func.func @transform_5(%arg0: i32) -> (i32, i32) {
    %c0_i32 = arith.constant 0 : i32
    %c0_i32_0 = arith.constant 0 : i32
    %c0_i32_1 = arith.constant 0 : i32
    return %c0_i32, %c0_i32_0 : i32, i32
  }
  func.func @transform_6(%arg0: i32) -> (i32, i32) {
    %c0_i32 = arith.constant 0 : i32
    %c0_i32_0 = arith.constant 0 : i32
    %c0_i32_1 = arith.constant 0 : i32
    return %c0_i32, %c0_i32_0 : i32, i32
  }
  func.func @transform_7(%arg0: i32) -> (i32, i32) {
    %c0_i32 = arith.constant 0 : i32
    %c0_i32_0 = arith.constant 0 : i32
    %c0_i32_1 = arith.constant 0 : i32
    return %c0_i32, %c0_i32_0 : i32, i32
  }
  func.func @transform_8(%arg0: i32) -> (i32, i32) {
    %c0_i32 = arith.constant 0 : i32
    %c0_i32_0 = arith.constant 0 : i32
    %c0_i32_1 = arith.constant 0 : i32
    return %c0_i32, %c0_i32_0 : i32, i32
  }
}

</mosaic_0001>

<llo_original>
// kernel: tpu_custom_call.1
$region0: #{tpu_custom_call.1}
  #allocation0 [shape = 'u32[]', space=smem, size = 0x4, offset = 0x4, fixed_abs, tag = 'smem constant byte address 0x4 - core index']
  #allocation1 [shape = 'u32[144,128]{1,0:T(1,128)}', space=vmem, size = 0x12000, scoped, tag = 'internal scratch']
  #allocation2 [shape = 'f32[1,1]{1,0:T(1,128)S(1)}', space=vmem, size = 0x200, scoped, tag = 'scoped memory for tpu_custom_call.1']
  %s0 = inlined_call_operand.vmem [shape: s32[128,1], index: 0, kind: input, shape index: {}]
  %s1 = inlined_call_operand.vmem [shape: bf16[64,128], index: 1, kind: input, shape index: {}]
  %s2 = inlined_call_operand.vmem [shape: bf16[32,128], index: 2, kind: input, shape index: {}]
  %s3 = inlined_call_operand.vmem [shape: f32[1,128], index: 3, kind: input, shape index: {}]
  %s4 = inlined_call_operand.vmem [shape: bf16[64,128], index: 4, kind: input, shape index: {}]
  %s5 = inlined_call_operand.vmem [shape: f32[1,128], index: 5, kind: input, shape index: {}]
  %s6 = inlined_call_operand.vmem [shape: bf16[32,1], index: 6, kind: input, shape index: {}]
  %s7 = inlined_call_operand.<no memory space> [shape: f32[1,1], index: 7, kind: input, shape index: {}]
  %s8 = inlined_call_operand.vmem [shape: f32[16,1], index: 8, kind: output, shape index: {}]
  %s9 = sld [smem:[#allocation0]]
  $region42: #{tpu_custom_call.1} parent=0
    _
  %s11 = ssub.s32 1, %s9
  %s12 = scalar_select 0, %s11, %s9
  %v13 = vstv %s7
  %14 = vst [vmem:[#allocation2] sm:$0x1] %v13
  // Predicated region
  $region2: #{tpu_custom_call.1} parent=0 // pred_check
    _
  $region3: #{tpu_custom_call.1} parent=0 // pred_check_branch
    %16 = sbr.rel (0) target = $region5
  $region4: #{tpu_custom_call.1} parent=0 // pred_region
    _
  $region5: #{tpu_custom_call.1} parent=0 // pred_fallthru
    _
  // Predicated region
  $region6: #{tpu_custom_call.1} parent=0 // pred_check
    _
  $region7: #{tpu_custom_call.1} parent=0 // pred_check_branch
    %18 = sbr.rel (0) target = $region9
  $region8: #{tpu_custom_call.1} parent=0 // pred_region
    _
  $region9: #{tpu_custom_call.1} parent=0 // pred_fallthru
    _
  // Predicated region
  $region10: #{tpu_custom_call.1} parent=0 // pred_check
    _
  $region11: #{tpu_custom_call.1} parent=0 // pred_check_branch
    %20 = sbr.rel (0) target = $region13
  $region12: #{tpu_custom_call.1} parent=0 // pred_region
    _
  $region13: #{tpu_custom_call.1} parent=0 // pred_fallthru
    _
  // Predicated region
  $region14: #{tpu_custom_call.1} parent=0 // pred_check
    _
  $region15: #{tpu_custom_call.1} parent=0 // pred_check_branch
    %22 = sbr.rel (0) target = $region17
  $region16: #{tpu_custom_call.1} parent=0 // pred_region
    _
  $region17: #{tpu_custom_call.1} parent=0 // pred_fallthru
    _
  // Predicated region
  $region18: #{tpu_custom_call.1} parent=0 // pred_check
    _
  $region19: #{tpu_custom_call.1} parent=0 // pred_check_branch
    %24 = sbr.rel (0) target = $region21
  $region20: #{tpu_custom_call.1} parent=0 // pred_region
    _
  $region21: #{tpu_custom_call.1} parent=0 // pred_fallthru
    _
  // Predicated region
  $region22: #{tpu_custom_call.1} parent=0 // pred_check
    _
  $region23: #{tpu_custom_call.1} parent=0 // pred_check_branch
    %26 = sbr.rel (0) target = $region25
  $region24: #{tpu_custom_call.1} parent=0 // pred_region
    _
  $region25: #{tpu_custom_call.1} parent=0 // pred_fallthru
    _
  // Predicated region
  $region26: #{tpu_custom_call.1} parent=0 // pred_check
    _
  $region27: #{tpu_custom_call.1} parent=0 // pred_check_branch
    %28 = sbr.rel (0) target = $region29
  $region28: #{tpu_custom_call.1} parent=0 // pred_region
    _
  $region29: #{tpu_custom_call.1} parent=0 // pred_fallthru
    _
  // Predicated region
  $region30: #{tpu_custom_call.1} parent=0 // pred_check
    _
  $region31: #{tpu_custom_call.1} parent=0 // pred_check_branch
    %30 = sbr.rel (0) target = $region33
  $region32: #{tpu_custom_call.1} parent=0 // pred_region
    _
  $region33: #{tpu_custom_call.1} parent=0 // pred_fallthru
    _
  %v32 = vld [vmem:[%s0] sm:$0xff]
  %v33 = vld [vmem:[%s0 + $0x8] sm:$0xff]
  %v34 = vld [vmem:[%s0 + $0x10] sm:$0xff]
  %v35 = vld [vmem:[%s0 + $0x18] sm:$0xff]
  %v36 = vld [vmem:[%s0 + $0x20] sm:$0xff]
  %v37 = vld [vmem:[%s0 + $0x28] sm:$0xff]
  %v38 = vld [vmem:[%s0 + $0x30] sm:$0xff]
  %v39 = vld [vmem:[%s0 + $0x38] sm:$0xff]
  %v40 = vld [vmem:[%s0 + $0x40] sm:$0xff]
  %v41 = vld [vmem:[%s0 + $0x48] sm:$0xff]
  %v42 = vld [vmem:[%s0 + $0x50] sm:$0xff]
  %v43 = vld [vmem:[%s0 + $0x58] sm:$0xff]
  %v44 = vld [vmem:[%s0 + $0x60] sm:$0xff]
  %v45 = vld [vmem:[%s0 + $0x68] sm:$0xff]
  %v46 = vld [vmem:[%s0 + $0x70] sm:$0xff]
  %v47 = vld [vmem:[%s0 + $0x78] sm:$0xff]
  %v48 = vlaneseq
  %v49 = vand.u32 %v48, 127
  %50 = vset.pattern.permute.xlu0 0
  %51 = vperm.xlu0 %50, %v32
  %v52 = vpop.permute.xlu0 %51
  %53 = vset.pattern.permute.xlu0 0
  %54 = vperm.xlu0 %53, %v33
  %v55 = vpop.permute.xlu0 %54
  %56 = vset.pattern.permute.xlu0 0
  %57 = vperm.xlu0 %56, %v34
  %v58 = vpop.permute.xlu0 %57
  %59 = vset.pattern.permute.xlu0 0
  %60 = vperm.xlu0 %59, %v35
  %v61 = vpop.permute.xlu0 %60
  %62 = vset.pattern.permute.xlu0 0
  %63 = vperm.xlu0 %62, %v36
  %v64 = vpop.permute.xlu0 %63
  %65 = vset.pattern.permute.xlu0 0
  %66 = vperm.xlu0 %65, %v37
  %v67 = vpop.permute.xlu0 %66
  %68 = vset.pattern.permute.xlu0 0
  %69 = vperm.xlu0 %68, %v38
  %v70 = vpop.permute.xlu0 %69
  %71 = vset.pattern.permute.xlu0 0
  %72 = vperm.xlu0 %71, %v39
  %v73 = vpop.permute.xlu0 %72
  %74 = vset.pattern.permute.xlu0 0
  %75 = vperm.xlu0 %74, %v40
  %v76 = vpop.permute.xlu0 %75
  %77 = vset.pattern.permute.xlu0 0
  %78 = vperm.xlu0 %77, %v41
  %v79 = vpop.permute.xlu0 %78
  %80 = vset.pattern.permute.xlu0 0
  %81 = vperm.xlu0 %80, %v42
  %v82 = vpop.permute.xlu0 %81
  %83 = vset.pattern.permute.xlu0 0
  %84 = vperm.xlu0 %83, %v43
  %v85 = vpop.permute.xlu0 %84
  %86 = vset.pattern.permute.xlu0 0
  %87 = vperm.xlu0 %86, %v44
  %v88 = vpop.permute.xlu0 %87
  %89 = vset.pattern.permute.xlu0 0
  %90 = vperm.xlu0 %89, %v45
  %v91 = vpop.permute.xlu0 %90
  %92 = vset.pattern.permute.xlu0 0
  %93 = vperm.xlu0 %92, %v46
  %v94 = vpop.permute.xlu0 %93
  %95 = vset.pattern.permute.xlu0 0
  %96 = vperm.xlu0 %95, %v47
  %v97 = vpop.permute.xlu0 %96
  %vm98 = vcmp.eq.s32.totalorder %v52, %v49
  %vm99 = vcmp.eq.s32.totalorder %v55, %v49
  %vm100 = vcmp.eq.s32.totalorder %v58, %v49
  %vm101 = vcmp.eq.s32.totalorder %v61, %v49
  %vm102 = vcmp.eq.s32.totalorder %v64, %v49
  %vm103 = vcmp.eq.s32.totalorder %v67, %v49
  %vm104 = vcmp.eq.s32.totalorder %v70, %v49
  %vm105 = vcmp.eq.s32.totalorder %v73, %v49
  %vm106 = vcmp.eq.s32.totalorder %v76, %v49
  %vm107 = vcmp.eq.s32.totalorder %v79, %v49
  %vm108 = vcmp.eq.s32.totalorder %v82, %v49
  %vm109 = vcmp.eq.s32.totalorder %v85, %v49
  %vm110 = vcmp.eq.s32.totalorder %v88, %v49
  %vm111 = vcmp.eq.s32.totalorder %v91, %v49
  %vm112 = vcmp.eq.s32.totalorder %v94, %v49
  %vm113 = vcmp.eq.s32.totalorder %v97, %v49
  %v114 = vsel %vm98, 1, 0
  %v115 = vsel %vm99, 1, 0
  %v116 = vsel %vm100, 1, 0
  %v117 = vsel %vm101, 1, 0
  %v118 = vsel %vm102, 1, 0
  %v119 = vsel %vm103, 1, 0
  %v120 = vsel %vm104, 1, 0
  %v121 = vsel %vm105, 1, 0
  %v122 = vsel %vm106, 1, 0
  %v123 = vsel %vm107, 1, 0
  %v124 = vsel %vm108, 1, 0
  %v125 = vsel %vm109, 1, 0
  %v126 = vsel %vm110, 1, 0
  %v127 = vsel %vm111, 1, 0
  %v128 = vsel %vm112, 1, 0
  %v129 = vsel %vm113, 1, 0
  %v130 = vcvt.s32.f32 %v114
  %v131 = vcvt.s32.f32 %v115
  %v132 = vcvt.s32.f32 %v116
  %v133 = vcvt.s32.f32 %v117
  %v134 = vcvt.s32.f32 %v118
  %v135 = vcvt.s32.f32 %v119
  %v136 = vcvt.s32.f32 %v120
  %v137 = vcvt.s32.f32 %v121
  %v138 = vcvt.s32.f32 %v122
  %v139 = vcvt.s32.f32 %v123
  %v140 = vcvt.s32.f32 %v124
  %v141 = vcvt.s32.f32 %v125
  %v142 = vcvt.s32.f32 %v126
  %v143 = vcvt.s32.f32 %v127
  %v144 = vcvt.s32.f32 %v128
  %v145 = vcvt.s32.f32 %v129
  %v146 = vpack.c.bf16 %v131, %v130
  %v147 = vpack.c.bf16 %v133, %v132
  %v148 = vpack.c.bf16 %v135, %v134
  %v149 = vpack.c.bf16 %v137, %v136
  %v150 = vpack.c.bf16 %v139, %v138
  %v151 = vpack.c.bf16 %v141, %v140
  %v152 = vpack.c.bf16 %v143, %v142
  %v153 = vpack.c.bf16 %v145, %v144
  %v154 = vld [vmem:[%s1] sm:$0xf]
  %v155 = vld [vmem:[%s1 + $0x4] sm:$0xf]
  %v156 = vld [vmem:[%s1 + $0x8] sm:$0xf]
  %v157 = vld [vmem:[%s1 + $0xc] sm:$0xf]
  %v158 = vld [vmem:[%s1 + $0x10] sm:$0xf]
  %v159 = vld [vmem:[%s1 + $0x14] sm:$0xf]
  %v160 = vld [vmem:[%s1 + $0x18] sm:$0xf]
  %v161 = vld [vmem:[%s1 + $0x1c] sm:$0xf]
  %v162 = vld [vmem:[%s3] sm:$0x1]
  %v164 = vlaneseq
  %v165 = vshrl.u32 %v164, 7
  %v166 = vsub.s32 0, %v165
  %v167 = vrot.slane %v162, %v166
  %v177 = vunpack.c.l.b16 %v154
  %v178 = vunpack.c.l.b16 %v155
  %v179 = vunpack.c.l.b16 %v156
  %v180 = vunpack.c.l.b16 %v157
  %v181 = vunpack.c.l.b16 %v158
  %v182 = vunpack.c.l.b16 %v159
  %v183 = vunpack.c.l.b16 %v160
  %v184 = vunpack.c.l.b16 %v161
  %v185 = vpack.c.b16 %v178, %v177
  %v186 = vpack.c.b16 %v180, %v179
  %v187 = vpack.c.b16 %v182, %v181
  %v188 = vpack.c.b16 %v184, %v183
  %vm193 = vcmask 523264
  %v195 = vsel %vm193, %v146, 0
  %v198 = vsel %vm193, %v147, 0
  %v201 = vsel %vm193, %v148, 0
  %v204 = vsel %vm193, %v149, 0
  %v207 = vsel %vm193, %v150, 0
  %v210 = vsel %vm193, %v151, 0
  %v213 = vsel %vm193, %v152, 0
  %v216 = vsel %vm193, %v153, 0
  %218 = vmatprep.subr.bf16.mxu0 0
  %219 = vmatpush1.bf16.msra.mxu0 %v185
  %220 = vmatprep.subr.bf16.mxu0 0
  %221 = vmatpush1.bf16.msra.mxu0 %v186
  %222 = vmatprep.subr.bf16.mxu0 0
  %223 = vmatpush1.bf16.msra.mxu0 %v187
  %224 = vmatprep.subr.bf16.mxu0 0
  %225 = vmatpush1.bf16.msra.mxu0 %v188
  %226 = vmatprep.subr.bf16.mxu0 0
  %227 = vmatpush1.bf16.msra.mxu0 0
  %228 = vmatprep.subr.bf16.mxu0 0
  %229 = vmatpush1.bf16.msra.mxu0 0
  %230 = vmatprep.subr.bf16.mxu0 0
  %231 = vmatpush1.bf16.msra.mxu0 0
  %232 = vmatprep.subr.bf16.mxu0 0
  %233 = vmatpush1.bf16.msra.mxu0 0
  %234 = vmatprep.subr.bf16.mxu0 0
  %235 = vmatpush1.bf16.msra.mxu0 0
  %236 = vmatprep.subr.bf16.mxu0 0
  %237 = vmatpush1.bf16.msra.mxu0 0
  %238 = vmatprep.subr.bf16.mxu0 0
  %239 = vmatpush1.bf16.msra.mxu0 0
  %240 = vmatprep.subr.bf16.mxu0 0
  %241 = vmatpush1.bf16.msra.mxu0 0
  %242 = vmatprep.subr.bf16.mxu0 0
  %243 = vmatpush1.bf16.msra.mxu0 0
  %244 = vmatprep.subr.bf16.mxu0 0
  %245 = vmatpush1.bf16.msra.mxu0 0
  %246 = vmatprep.subr.bf16.mxu0 0
  %247 = vmatpush1.bf16.msra.mxu0 0
  %248 = vmatprep.subr.bf16.mxu0 0
  %249 = vmatpush1.bf16.msra.mxu0 0
  %250 = vmatprep.mubr.bf16.mxu0 0
  %251 = vmatmul.mubr.bf16.gmra.mrb[0].mxu0 %v195
  %v252 = vpop.f32.mrb[0].mxu0
  %v253 = vadd.f32 %v167, %v252
  %v254 = vpop.f32.mrb[0].mxu0
  %v255 = vpop.f32.mrb[0].mxu0
  %v256 = vadd.f32 %v167, %v255
  %v257 = vpop.f32.mrb[0].mxu0
  %258 = vmatprep.mubr.bf16.mxu0 0
  %259 = vmatmul.mubr.bf16.gmra.mrb[0].mxu0 %v198
  %v260 = vpop.f32.mrb[0].mxu0
  %v261 = vadd.f32 %v167, %v260
  %v262 = vpop.f32.mrb[0].mxu0
  %v263 = vpop.f32.mrb[0].mxu0
  %v264 = vadd.f32 %v167, %v263
  %v265 = vpop.f32.mrb[0].mxu0
  %266 = vmatprep.mubr.bf16.mxu0 0
  %267 = vmatmul.mubr.bf16.gmra.mrb[0].mxu0 %v201
  %v268 = vpop.f32.mrb[0].mxu0
  %v269 = vadd.f32 %v167, %v268
  %v270 = vpop.f32.mrb[0].mxu0
  %v271 = vpop.f32.mrb[0].mxu0
  %v272 = vadd.f32 %v167, %v271
  %v273 = vpop.f32.mrb[0].mxu0
  %274 = vmatprep.mubr.bf16.mxu0 0
  %275 = vmatmul.mubr.bf16.gmra.mrb[0].mxu0 %v204
  %v276 = vpop.f32.mrb[0].mxu0
  %v277 = vadd.f32 %v167, %v276
  %v278 = vpop.f32.mrb[0].mxu0
  %v279 = vpop.f32.mrb[0].mxu0
  %v280 = vadd.f32 %v167, %v279
  %v281 = vpop.f32.mrb[0].mxu0
  %282 = vmatprep.mubr.bf16.mxu0 0
  %283 = vmatmul.mubr.bf16.gmra.mrb[0].mxu0 %v207
  %v284 = vpop.f32.mrb[0].mxu0
  %v285 = vadd.f32 %v167, %v284
  %v286 = vpop.f32.mrb[0].mxu0
  %v287 = vpop.f32.mrb[0].mxu0
  %v288 = vadd.f32 %v167, %v287
  %v289 = vpop.f32.mrb[0].mxu0
  %290 = vmatprep.mubr.bf16.mxu0 0
  %291 = vmatmul.mubr.bf16.gmra.mrb[0].mxu0 %v210
  %v292 = vpop.f32.mrb[0].mxu0
  %v293 = vadd.f32 %v167, %v292
  %v294 = vpop.f32.mrb[0].mxu0
  %v295 = vpop.f32.mrb[0].mxu0
  %v296 = vadd.f32 %v167, %v295
  %v297 = vpop.f32.mrb[0].mxu0
  %298 = vmatprep.mubr.bf16.mxu0 0
  %299 = vmatmul.mubr.bf16.gmra.mrb[0].mxu0 %v213
  %v300 = vpop.f32.mrb[0].mxu0
  %v301 = vadd.f32 %v167, %v300
  %v302 = vpop.f32.mrb[0].mxu0
  %v303 = vpop.f32.mrb[0].mxu0
  %v304 = vadd.f32 %v167, %v303
  %v305 = vpop.f32.mrb[0].mxu0
  %306 = vmatprep.mubr.bf16.mxu0 0
  %307 = vmatmul.mubr.bf16.gmra.mrb[0].mxu0 %v216
  %v308 = vpop.f32.mrb[0].mxu0
  %v309 = vadd.f32 %v167, %v308
  %v310 = vpop.f32.mrb[0].mxu0
  %v311 = vpop.f32.mrb[0].mxu0
  %v312 = vadd.f32 %v167, %v311
  %v313 = vpop.f32.mrb[0].mxu0
  %314 = vdwg.mxu0
  %v315 = vld [vmem:[%s2] sm:$0xf]
  %v316 = vld [vmem:[%s2 + $0x4] sm:$0xf]
  %v317 = vld [vmem:[%s2 + $0x8] sm:$0xf]
  %v318 = vld [vmem:[%s2 + $0xc] sm:$0xf]
  %v319 = vld [vmem:[%s4] sm:$0xf]
  %v320 = vld [vmem:[%s4 + $0x4] sm:$0xf]
  %v321 = vld [vmem:[%s4 + $0x8] sm:$0xf]
  %v322 = vld [vmem:[%s4 + $0xc] sm:$0xf]
  %v323 = vld [vmem:[%s4 + $0x10] sm:$0xf]
  %v324 = vld [vmem:[%s4 + $0x14] sm:$0xf]
  %v325 = vld [vmem:[%s4 + $0x18] sm:$0xf]
  %v326 = vld [vmem:[%s4 + $0x1c] sm:$0xf]
  %v327 = vld [vmem:[%s5] sm:$0x1]
  %v332 = vunpack.c.l.b16 %v315
  %v333 = vunpack.c.l.b16 %v316
  %v334 = vunpack.c.l.b16 %v317
  %v335 = vunpack.c.l.b16 %v318
  %v336 = vpack.c.b16 %v333, %v332
  %v337 = vpack.c.b16 %v335, %v334
  %vm340 = vcmask 261120
  %v342 = vsel %vm340, 0, 0
  %344 = vmatprep.subr.bf16.mxu0 0
  %345 = vmatpush1.bf16.msra.mxu0 %v336
  %346 = vmatprep.subr.bf16.mxu0 0
  %347 = vmatpush1.bf16.msra.mxu0 %v337
  %348 = vmatprep.subr.bf16.mxu0 0
  %349 = vmatpush1.bf16.msra.mxu0 0
  %350 = vmatprep.subr.bf16.mxu0 0
  %351 = vmatpush1.bf16.msra.mxu0 0
  %352 = vmatprep.subr.bf16.mxu0 0
  %353 = vmatpush1.bf16.msra.mxu0 0
  %354 = vmatprep.subr.bf16.mxu0 0
  %355 = vmatpush1.bf16.msra.mxu0 0
  %356 = vmatprep.subr.bf16.mxu0 0
  %357 = vmatpush1.bf16.msra.mxu0 0
  %358 = vmatprep.subr.bf16.mxu0 0
  %359 = vmatpush1.bf16.msra.mxu0 0
  %360 = vmatprep.subr.bf16.mxu0 0
  %361 = vmatpush1.bf16.msra.mxu0 0
  %362 = vmatprep.subr.bf16.mxu0 0
  %363 = vmatpush1.bf16.msra.mxu0 0
  %364 = vmatprep.subr.bf16.mxu0 0
  %365 = vmatpush1.bf16.msra.mxu0 0
  %366 = vmatprep.subr.bf16.mxu0 0
  %367 = vmatpush1.bf16.msra.mxu0 0
  %368 = vmatprep.subr.bf16.mxu0 0
  %369 = vmatpush1.bf16.msra.mxu0 0
  %370 = vmatprep.subr.bf16.mxu0 0
  %371 = vmatpush1.bf16.msra.mxu0 0
  %372 = vmatprep.subr.bf16.mxu0 0
  %373 = vmatpush1.bf16.msra.mxu0 0
  %374 = vmatprep.subr.bf16.mxu0 0
  %375 = vmatpush1.bf16.msra.mxu0 0
  %376 = vmatprep.mubr.bf16.mxu0 0
  %377 = vmatmul.mubr.bf16.gmra.mrb[0].mxu0 %v342
  %v378 = vpop.f32.mrb[0].mxu0
  %v379 = vadd.f32 0.0, %v378
  %v380 = vpop.f32.mrb[0].mxu0
  %v381 = vpop.f32.mrb[0].mxu0
  %v382 = vadd.f32 0.0, %v381
  %v383 = vpop.f32.mrb[0].mxu0
  %384 = vdwg.mxu0
  %v385 = vadd.f32 %v253, %v379
  %v386 = vadd.f32 %v256, %v382
  %v387 = vxor.u32 %v385, 2147483648
  %v388 = vxor.u32 %v386, 2147483648
  %v389 = vmul.f32 %v387, 1.442695
  %v390 = vpow.pop %v389
  %v391 = vmul.f32 %v388, 1.442695
  %v392 = vpow.pop %v391
  %v393 = vadd.f32 %v390, 1.0
  %v394 = vadd.f32 %v392, 1.0
  %v395 = vrcp.pop %v393
  %v396 = vmul.f32 1.0, %v395
  %v397 = vrcp.pop %v394
  %v398 = vmul.f32 1.0, %v397
  %v399 = vmul.f32 %v396, 2.0
  %v400 = vmul.f32 %v398, 2.0
  %v401 = vsub.f32 %v399, 1.0
  %v402 = vsub.f32 %v400, 1.0
  %v403 = vmul.f32 %v396, 0.0
  %v404 = vmul.f32 %v398, 0.0
  %407 = vrot.lane.b32.xlu0 %v401, 64
  %v408 = vpop.permute.xlu0 %407
  %409 = vrot.lane.b32.xlu0 %v402, 64
  %v410 = vpop.permute.xlu0 %409
  %v413 = vmul.f32 %v396, %v408
  %v414 = vmul.f32 %v398, %v410
  %417 = vrot.lane.b32.xlu0 %v413, 32
  %v418 = vpop.permute.xlu0 %417
  %419 = vrot.lane.b32.xlu0 %v414, 32
  %v420 = vpop.permute.xlu0 %419
  %v423 = vadd.f32 %v403, %v418
  %v424 = vadd.f32 %v404, %v420
  %v425 = vtanh.pop %v423
  %v426 = vtanh.pop %v424
  %429 = vrot.lane.b32.xlu0 %v425, 64
  %v430 = vpop.permute.xlu0 %429
  %431 = vrot.lane.b32.xlu0 %v426, 64
  %v432 = vpop.permute.xlu0 %431
  %v435 = vmul.f32 %v396, %v430
  %v436 = vmul.f32 %v398, %v432
  %439 = vrot.lane.b32.xlu0 %v435, 32
  %v440 = vpop.permute.xlu0 %439
  %441 = vrot.lane.b32.xlu0 %v436, 32
  %v442 = vpop.permute.xlu0 %441
  %v445 = vsel %vm340, %v440, 0.0
  %v446 = vsel %vm340, %v442, 0.0
  %v447 = vpack.c.bf16 %v446, %v445
  %v449 = vlaneseq
  %v450 = vshrl.u32 %v449, 7
  %v451 = vsub.s32 0, %v450
  %v452 = vrot.slane %v327, %v451
  %v462 = vunpack.c.l.b16 %v319
  %v463 = vunpack.c.l.b16 %v320
  %v464 = vunpack.c.l.b16 %v321
  %v465 = vunpack.c.l.b16 %v322
  %v466 = vunpack.c.l.b16 %v323
  %v467 = vunpack.c.l.b16 %v324
  %v468 = vunpack.c.l.b16 %v325
  %v469 = vunpack.c.l.b16 %v326
  %v470 = vpack.c.b16 %v463, %v462
  %v471 = vpack.c.b16 %v465, %v464
  %v472 = vpack.c.b16 %v467, %v466
  %v473 = vpack.c.b16 %v469, %v468
  %v479 = vsel %vm193, %v447, 0
  %481 = vmatprep.subr.bf16.mxu0 0
  %482 = vmatpush1.bf16.msra.mxu0 %v470
  %483 = vmatprep.subr.bf16.mxu0 0
  %484 = vmatpush1.bf16.msra.mxu0 %v471
  %485 = vmatprep.subr.bf16.mxu0 0
  %486 = vmatpush1.bf16.msra.mxu0 %v472
  %487 = vmatprep.subr.bf16.mxu0 0
  %488 = vmatpush1.bf16.msra.mxu0 %v473
  %489 = vmatprep.subr.bf16.mxu0 0
  %490 = vmatpush1.bf16.msra.mxu0 0
  %491 = vmatprep.subr.bf16.mxu0 0
  %492 = vmatpush1.bf16.msra.mxu0 0
  %493 = vmatprep.subr.bf16.mxu0 0
  %494 = vmatpush1.bf16.msra.mxu0 0
  %495 = vmatprep.subr.bf16.mxu0 0
  %496 = vmatpush1.bf16.msra.mxu0 0
  %497 = vmatprep.subr.bf16.mxu0 0
  %498 = vmatpush1.bf16.msra.mxu0 0
  %499 = vmatprep.subr.bf16.mxu0 0
  %500 = vmatpush1.bf16.msra.mxu0 0
  %501 = vmatprep.subr.bf16.mxu0 0
  %502 = vmatpush1.bf16.msra.mxu0 0
  %503 = vmatprep.subr.bf16.mxu0 0
  %504 = vmatpush1.bf16.msra.mxu0 0
  %505 = vmatprep.subr.bf16.mxu0 0
  %506 = vmatpush1.bf16.msra.mxu0 0
  %507 = vmatprep.subr.bf16.mxu0 0
  %508 = vmatpush1.bf16.msra.mxu0 0
  %509 = vmatprep.subr.bf16.mxu0 0
  %510 = vmatpush1.bf16.msra.mxu0 0
  %511 = vmatprep.subr.bf16.mxu0 0
  %512 = vmatpush1.bf16.msra.mxu0 0
  %513 = vmatprep.mubr.bf16.mxu0 0
  %514 = vmatmul.mubr.bf16.gmra.mrb[0].mxu0 %v479
  %v515 = vpop.f32.mrb[0].mxu0
  %v516 = vadd.f32 %v452, %v515
  %v517 = vpop.f32.mrb[0].mxu0
  %v518 = vpop.f32.mrb[0].mxu0
  %v519 = vadd.f32 %v452, %v518
  %v520 = vpop.f32.mrb[0].mxu0
  %521 = vdwg.mxu0
  %v522 = vxor.u32 %v516, 2147483648
  %v523 = vxor.u32 %v519, 2147483648
  %v524 = vmul.f32 %v522, 1.442695
  %v525 = vpow.pop %v524
  %v526 = vmul.f32 %v523, 1.442695
  %v527 = vpow.pop %v526
  %v528 = vadd.f32 %v525, 1.0
  %v529 = vadd.f32 %v527, 1.0
  %v530 = vrcp.pop %v528
  %v531 = vmul.f32 1.0, %v530
  %v532 = vrcp.pop %v529
  %v533 = vmul.f32 1.0, %v532
  %v534 = vmul.f32 %v531, 2.0
  %v535 = vmul.f32 %v533, 2.0
  %v536 = vsub.f32 %v534, 1.0
  %v537 = vsub.f32 %v535, 1.0
  %v538 = vmul.f32 %v531, 0.0
  %v539 = vmul.f32 %v533, 0.0
  %542 = vrot.lane.b32.xlu0 %v536, 64
  %v543 = vpop.permute.xlu0 %542
  %544 = vrot.lane.b32.xlu0 %v537, 64
  %v545 = vpop.permute.xlu0 %544
  %v548 = vmul.f32 %v531, %v543
  %v549 = vmul.f32 %v533, %v545
  %552 = vrot.lane.b32.xlu0 %v548, 32
  %v553 = vpop.permute.xlu0 %552
  %554 = vrot.lane.b32.xlu0 %v549, 32
  %v555 = vpop.permute.xlu0 %554
  %v558 = vadd.f32 %v538, %v553
  %v559 = vadd.f32 %v539, %v555
  %v560 = vtanh.pop %v558
  %v561 = vtanh.pop %v559
  %564 = vrot.lane.b32.xlu0 %v560, 64
  %v565 = vpop.permute.xlu0 %564
  %566 = vrot.lane.b32.xlu0 %v561, 64
  %v567 = vpop.permute.xlu0 %566
  %v570 = vmul.f32 %v531, %v565
  %v571 = vmul.f32 %v533, %v567
  %v572 = vpack.c.bf16 %v436, %v435
  %574 = vrot.lane.b32.xlu0 %v572, 32
  %v575 = vpop.permute.xlu0 %574
  %v577 = vsel %vm340, %v575, 0
  %579 = vmatprep.subr.bf16.mxu0 0
  %580 = vmatpush1.bf16.msra.mxu0 %v336
  %581 = vmatprep.subr.bf16.mxu0 0
  %582 = vmatpush1.bf16.msra.mxu0 %v337
  %583 = vmatprep.subr.bf16.mxu0 0
  %584 = vmatpush1.bf16.msra.mxu0 0
  %585 = vmatprep.subr.bf16.mxu0 0
  %586 = vmatpush1.bf16.msra.mxu0 0
  %587 = vmatprep.subr.bf16.mxu0 0
  %588 = vmatpush1.bf16.msra.mxu0 0
  %589 = vmatprep.subr.bf16.mxu0 0
  %590 = vmatpush1.bf16.msra.mxu0 0
  %591 = vmatprep.subr.bf16.mxu0 0
  %592 = vmatpush1.bf16.msra.mxu0 0
  %593 = vmatprep.subr.bf16.mxu0 0
  %594 = vmatpush1.bf16.msra.mxu0 0
  %595 = vmatprep.subr.bf16.mxu0 0
  %596 = vmatpush1.bf16.msra.mxu0 0
  %597 = vmatprep.subr.bf16.mxu0 0
  %598 = vmatpush1.bf16.msra.mxu0 0
  %599 = vmatprep.subr.bf16.mxu0 0
  %600 = vmatpush1.bf16.msra.mxu0 0
  %601 = vmatprep.subr.bf16.mxu0 0
  %602 = vmatpush1.bf16.msra.mxu0 0
  %603 = vmatprep.subr.bf16.mxu0 0
  %604 = vmatpush1.bf16.msra.mxu0 0
  %605 = vmatprep.subr.bf16.mxu0 0
  %606 = vmatpush1.bf16.msra.mxu0 0
  %607 = vmatprep.subr.bf16.mxu0 0
  %608 = vmatpush1.bf16.msra.mxu0 0
  %609 = vmatprep.subr.bf16.mxu0 0
  %610 = vmatpush1.bf16.msra.mxu0 0
  %611 = vmatprep.mubr.bf16.mxu0 0
  %612 = vmatmul.mubr.bf16.gmra.mrb[0].mxu0 %v577
  %v613 = vpop.f32.mrb[0].mxu0
  %v614 = vadd.f32 0.0, %v613
  %v615 = vpop.f32.mrb[0].mxu0
  %v616 = vpop.f32.mrb[0].mxu0
  %v617 = vadd.f32 0.0, %v616
  %v618 = vpop.f32.mrb[0].mxu0
  %619 = vdwg.mxu0
  %v620 = vadd.f32 %v261, %v614
  %v621 = vadd.f32 %v264, %v617
  %v622 = vxor.u32 %v620, 2147483648
  %v623 = vxor.u32 %v621, 2147483648
  %v624 = vmul.f32 %v622, 1.442695
  %v625 = vpow.pop %v624
  %v626 = vmul.f32 %v623, 1.442695
  %v627 = vpow.pop %v626
  %v628 = vadd.f32 %v625, 1.0
  %v629 = vadd.f32 %v627, 1.0
  %v630 = vrcp.pop %v628
  %v631 = vmul.f32 1.0, %v630
  %v632 = vrcp.pop %v629
  %v633 = vmul.f32 1.0, %v632
  %v634 = vmul.f32 %v631, 2.0
  %v635 = vmul.f32 %v633, 2.0
  %v636 = vsub.f32 %v634, 1.0
  %v637 = vsub.f32 %v635, 1.0
  %v638 = vmul.f32 %v631, %v423
  %v639 = vmul.f32 %v633, %v424
  %642 = vrot.lane.b32.xlu0 %v636, 64
  %v643 = vpop.permute.xlu0 %642
  %644 = vrot.lane.b32.xlu0 %v637, 64
  %v645 = vpop.permute.xlu0 %644
  %v648 = vmul.f32 %v631, %v643
  %v649 = vmul.f32 %v633, %v645
  %652 = vrot.lane.b32.xlu0 %v648, 32
  %v653 = vpop.permute.xlu0 %652
  %654 = vrot.lane.b32.xlu0 %v649, 32
  %v655 = vpop.permute.xlu0 %654
  %v658 = vadd.f32 %v638, %v653
  %v659 = vadd.f32 %v639, %v655
  %v660 = vtanh.pop %v658
  %v661 = vtanh.pop %v659
  %664 = vrot.lane.b32.xlu0 %v660, 64
  %v665 = vpop.permute.xlu0 %664
  %666 = vrot.lane.b32.xlu0 %v661, 64
  %v667 = vpop.permute.xlu0 %666
  %v670 = vmul.f32 %v631, %v665
  %v671 = vmul.f32 %v633, %v667
  %674 = vrot.lane.b32.xlu0 %v670, 32
  %v675 = vpop.permute.xlu0 %674
  %676 = vrot.lane.b32.xlu0 %v671, 32
  %v677 = vpop.permute.xlu0 %676
  %682 = vrot.lane.b32.xlu0 %v570, 64
  %v683 = vpop.permute.xlu0 %682
  %684 = vrot.lane.b32.xlu0 %v571, 64
  %v685 = vpop.permute.xlu0 %684
  %v688 = vsel %vm340, %v675, %v683
  %v689 = vsel %vm340, %v677, %v685
  %v690 = vpack.c.bf16 %v689, %v688
  %v692 = vsel %vm193, %v690, 0
  %694 = vmatprep.subr.bf16.mxu0 0
  %695 = vmatpush1.bf16.msra.mxu0 %v470
  %696 = vmatprep.subr.bf16.mxu0 0
  %697 = vmatpush1.bf16.msra.mxu0 %v471
  %698 = vmatprep.subr.bf16.mxu0 0
  %699 = vmatpush1.bf16.msra.mxu0 %v472
  %700 = vmatprep.subr.bf16.mxu0 0
  %701 = vmatpush1.bf16.msra.mxu0 %v473
  %702 = vmatprep.subr.bf16.mxu0 0
  %703 = vmatpush1.bf16.msra.mxu0 0
  %704 = vmatprep.subr.bf16.mxu0 0
  %705 = vmatpush1.bf16.msra.mxu0 0
  %706 = vmatprep.subr.bf16.mxu0 0
  %707 = vmatpush1.bf16.msra.mxu0 0
  %708 = vmatprep.subr.bf16.mxu0 0
  %709 = vmatpush1.bf16.msra.mxu0 0
  %710 = vmatprep.subr.bf16.mxu0 0
  %711 = vmatpush1.bf16.msra.mxu0 0
  %712 = vmatprep.subr.bf16.mxu0 0
  %713 = vmatpush1.bf16.msra.mxu0 0
  %714 = vmatprep.subr.bf16.mxu0 0
  %715 = vmatpush1.bf16.msra.mxu0 0
  %716 = vmatprep.subr.bf16.mxu0 0
  %717 = vmatpush1.bf16.msra.mxu0 0
  %718 = vmatprep.subr.bf16.mxu0 0
  %719 = vmatpush1.bf16.msra.mxu0 0
  %720 = vmatprep.subr.bf16.mxu0 0
  %721 = vmatpush1.bf16.msra.mxu0 0
  %722 = vmatprep.subr.bf16.mxu0 0
  %723 = vmatpush1.bf16.msra.mxu0 0
  %724 = vmatprep.subr.bf16.mxu0 0
  %725 = vmatpush1.bf16.msra.mxu0 0
  %726 = vmatprep.mubr.bf16.mxu0 0
  %727 = vmatmul.mubr.bf16.gmra.mrb[0].mxu0 %v692
  %v728 = vpop.f32.mrb[0].mxu0
  %v729 = vadd.f32 %v452, %v728
  %v730 = vpop.f32.mrb[0].mxu0
  %v731 = vpop.f32.mrb[0].mxu0
  %v732 = vadd.f32 %v452, %v731
  %v733 = vpop.f32.mrb[0].mxu0
  %734 = vdwg.mxu0
  %v735 = vxor.u32 %v729, 2147483648
  %v736 = vxor.u32 %v732, 2147483648
  %v737 = vmul.f32 %v735, 1.442695
  %v738 = vpow.pop %v737
  %v739 = vmul.f32 %v736, 1.442695
  %v740 = vpow.pop %v739
  %v741 = vadd.f32 %v738, 1.0
  %v742 = vadd.f32 %v740, 1.0
  %v743 = vrcp.pop %v741
  %v744 = vmul.f32 1.0, %v743
  %v745 = vrcp.pop %v742
  %v746 = vmul.f32 1.0, %v745
  %v747 = vmul.f32 %v744, 2.0
  %v748 = vmul.f32 %v746, 2.0
  %v749 = vsub.f32 %v747, 1.0
  %v750 = vsub.f32 %v748, 1.0
  %v751 = vmul.f32 %v744, %v558
  %v752 = vmul.f32 %v746, %v559
  %755 = vrot.lane.b32.xlu0 %v749, 64
  %v756 = vpop.permute.xlu0 %755
  %757 = vrot.lane.b32.xlu0 %v750, 64
  %v758 = vpop.permute.xlu0 %757
  %v761 = vmul.f32 %v744, %v756
  %v762 = vmul.f32 %v746, %v758
  %765 = vrot.lane.b32.xlu0 %v761, 32
  %v766 = vpop.permute.xlu0 %765
  %767 = vrot.lane.b32.xlu0 %v762, 32
  %v768 = vpop.permute.xlu0 %767
  %v771 = vadd.f32 %v751, %v766
  %v772 = vadd.f32 %v752, %v768
  %v773 = vtanh.pop %v771
  %v774 = vtanh.pop %v772
  %777 = vrot.lane.b32.xlu0 %v773, 64
  %v778 = vpop.permute.xlu0 %777
  %779 = vrot.lane.b32.xlu0 %v774, 64
  %v780 = vpop.permute.xlu0 %779
  %v783 = vmul.f32 %v744, %v778
  %v784 = vmul.f32 %v746, %v780
  %v785 = vpack.c.bf16 %v671, %v670
  %787 = vrot.lane.b32.xlu0 %v785, 32
  %v788 = vpop.permute.xlu0 %787
  %v790 = vsel %vm340, %v788, 0
  %792 = vmatprep.subr.bf16.mxu0 0
  %793 = vmatpush1.bf16.msra.mxu0 %v336
  %794 = vmatprep.subr.bf16.mxu0 0
  %795 = vmatpush1.bf16.msra.mxu0 %v337
  %796 = vmatprep.subr.bf16.mxu0 0
  %797 = vmatpush1.bf16.msra.mxu0 0
  %798 = vmatprep.subr.bf16.mxu0 0
  %799 = vmatpush1.bf16.msra.mxu0 0
  %800 = vmatprep.subr.bf16.mxu0 0
  %801 = vmatpush1.bf16.msra.mxu0 0
  %802 = vmatprep.subr.bf16.mxu0 0
  %803 = vmatpush1.bf16.msra.mxu0 0
  %804 = vmatprep.subr.bf16.mxu0 0
  %805 = vmatpush1.bf16.msra.mxu0 0
  %806 = vmatprep.subr.bf16.mxu0 0
  %807 = vmatpush1.bf16.msra.mxu0 0
  %808 = vmatprep.subr.bf16.mxu0 0
  %809 = vmatpush1.bf16.msra.mxu0 0
  %810 = vmatprep.subr.bf16.mxu0 0
  %811 = vmatpush1.bf16.msra.mxu0 0
  %812 = vmatprep.subr.bf16.mxu0 0
  %813 = vmatpush1.bf16.msra.mxu0 0
  %814 = vmatprep.subr.bf16.mxu0 0
  %815 = vmatpush1.bf16.msra.mxu0 0
  %816 = vmatprep.subr.bf16.mxu0 0
  %817 = vmatpush1.bf16.msra.mxu0 0
  %818 = vmatprep.subr.bf16.mxu0 0
  %819 = vmatpush1.bf16.msra.mxu0 0
  %820 = vmatprep.subr.bf16.mxu0 0
  %821 = vmatpush1.bf16.msra.mxu0 0
  %822 = vmatprep.subr.bf16.mxu0 0
  %823 = vmatpush1.bf16.msra.mxu0 0
  %824 = vmatprep.mubr.bf16.mxu0 0
  %825 = vmatmul.mubr.bf16.gmra.mrb[0].mxu0 %v790
  %v826 = vpop.f32.mrb[0].mxu0
  %v827 = vadd.f32 0.0, %v826
  %v828 = vpop.f32.mrb[0].mxu0
  %v829 = vpop.f32.mrb[0].mxu0
  %v830 = vadd.f32 0.0, %v829
  %v831 = vpop.f32.mrb[0].mxu0
  %832 = vdwg.mxu0
  %v833 = vadd.f32 %v269, %v827
  %v834 = vadd.f32 %v272, %v830
  %v835 = vxor.u32 %v833, 2147483648
  %v836 = vxor.u32 %v834, 2147483648
  %v837 = vmul.f32 %v835, 1.442695
  %v838 = vpow.pop %v837
  %v839 = vmul.f32 %v836, 1.442695
  %v840 = vpow.pop %v839
  %v841 = vadd.f32 %v838, 1.0
  %v842 = vadd.f32 %v840, 1.0
  %v843 = vrcp.pop %v841
  %v844 = vmul.f32 1.0, %v843
  %v845 = vrcp.pop %v842
  %v846 = vmul.f32 1.0, %v845
  %v847 = vmul.f32 %v844, 2.0
  %v848 = vmul.f32 %v846, 2.0
  %v849 = vsub.f32 %v847, 1.0
  %v850 = vsub.f32 %v848, 1.0
  %v851 = vmul.f32 %v844, %v658
  %v852 = vmul.f32 %v846, %v659
  %855 = vrot.lane.b32.xlu0 %v849, 64
  %v856 = vpop.permute.xlu0 %855
  %857 = vrot.lane.b32.xlu0 %v850, 64
  %v858 = vpop.permute.xlu0 %857
  %v861 = vmul.f32 %v844, %v856
  %v862 = vmul.f32 %v846, %v858
  %865 = vrot.lane.b32.xlu0 %v861, 32
  %v866 = vpop.permute.xlu0 %865
  %867 = vrot.lane.b32.xlu0 %v862, 32
  %v868 = vpop.permute.xlu0 %867
  %v871 = vadd.f32 %v851, %v866
  %v872 = vadd.f32 %v852, %v868
  %v873 = vtanh.pop %v871
  %v874 = vtanh.pop %v872
  %877 = vrot.lane.b32.xlu0 %v873, 64
  %v878 = vpop.permute.xlu0 %877
  %879 = vrot.lane.b32.xlu0 %v874, 64
  %v880 = vpop.permute.xlu0 %879
  %v883 = vmul.f32 %v844, %v878
  %v884 = vmul.f32 %v846, %v880
  %887 = vrot.lane.b32.xlu0 %v883, 32
  %v888 = vpop.permute.xlu0 %887
  %889 = vrot.lane.b32.xlu0 %v884, 32
  %v890 = vpop.permute.xlu0 %889
  %895 = vrot.lane.b32.xlu0 %v783, 64
  %v896 = vpop.permute.xlu0 %895
  %897 = vrot.lane.b32.xlu0 %v784, 64
  %v898 = vpop.permute.xlu0 %897
  %v901 = vsel %vm340, %v888, %v896
  %v902 = vsel %vm340, %v890, %v898
  %v903 = vpack.c.bf16 %v902, %v901
  %v905 = vsel %vm193, %v903, 0
  %907 = vmatprep.subr.bf16.mxu0 0
  %908 = vmatpush1.bf16.msra.mxu0 %v470
  %909 = vmatprep.subr.bf16.mxu0 0
  %910 = vmatpush1.bf16.msra.mxu0 %v471
  %911 = vmatprep.subr.bf16.mxu0 0
  %912 = vmatpush1.bf16.msra.mxu0 %v472
  %913 = vmatprep.subr.bf16.mxu0 0
  %914 = vmatpush1.bf16.msra.mxu0 %v473
  %915 = vmatprep.subr.bf16.mxu0 0
  %916 = vmatpush1.bf16.msra.mxu0 0
  %917 = vmatprep.subr.bf16.mxu0 0
  %918 = vmatpush1.bf16.msra.mxu0 0
  %919 = vmatprep.subr.bf16.mxu0 0
  %920 = vmatpush1.bf16.msra.mxu0 0
  %921 = vmatprep.subr.bf16.mxu0 0
  %922 = vmatpush1.bf16.msra.mxu0 0
  %923 = vmatprep.subr.bf16.mxu0 0
  %924 = vmatpush1.bf16.msra.mxu0 0
  %925 = vmatprep.subr.bf16.mxu0 0
  %926 = vmatpush1.bf16.msra.mxu0 0
  %927 = vmatprep.subr.bf16.mxu0 0
  %928 = vmatpush1.bf16.msra.mxu0 0
  %929 = vmatprep.subr.bf16.mxu0 0
  %930 = vmatpush1.bf16.msra.mxu0 0
  %931 = vmatprep.subr.bf16.mxu0 0
  %932 = vmatpush1.bf16.msra.mxu0 0
  %933 = vmatprep.subr.bf16.mxu0 0
  %934 = vmatpush1.bf16.msra.mxu0 0
  %935 = vmatprep.subr.bf16.mxu0 0
  %936 = vmatpush1.bf16.msra.mxu0 0
  %937 = vmatprep.subr.bf16.mxu0 0
  %938 = vmatpush1.bf16.msra.mxu0 0
  %939 = vmatprep.mubr.bf16.mxu0 0
  %940 = vmatmul.mubr.bf16.gmra.mrb[0].mxu0 %v905
  %v941 = vpop.f32.mrb[0].mxu0
  %v942 = vadd.f32 %v452, %v941
  %v943 = vpop.f32.mrb[0].mxu0
  %v944 = vpop.f32.mrb[0].mxu0
  %v945 = vadd.f32 %v452, %v944
  %v946 = vpop.f32.mrb[0].mxu0
  %947 = vdwg.mxu0
  %v948 = vxor.u32 %v942, 2147483648
  %v949 = vxor.u32 %v945, 2147483648
  %v950 = vmul.f32 %v948, 1.442695
  %v951 = vpow.pop %v950
  %v952 = vmul.f32 %v949, 1.442695
  %v953 = vpow.pop %v952
  %v954 = vadd.f32 %v951, 1.0
  %v955 = vadd.f32 %v953, 1.0
  %v956 = vrcp.pop %v954
  %v957 = vmul.f32 1.0, %v956
  %v958 = vrcp.pop %v955
  %v959 = vmul.f32 1.0, %v958
  %v960 = vmul.f32 %v957, 2.0
  %v961 = vmul.f32 %v959, 2.0
  %v962 = vsub.f32 %v960, 1.0
  %v963 = vsub.f32 %v961, 1.0
  %v964 = vmul.f32 %v957, %v771
  %v965 = vmul.f32 %v959, %v772
  %968 = vrot.lane.b32.xlu0 %v962, 64
  %v969 = vpop.permute.xlu0 %968
  %970 = vrot.lane.b32.xlu0 %v963, 64
  %v971 = vpop.permute.xlu0 %970
  %v974 = vmul.f32 %v957, %v969
  %v975 = vmul.f32 %v959, %v971
  %978 = vrot.lane.b32.xlu0 %v974, 32
  %v979 = vpop.permute.xlu0 %978
  %980 = vrot.lane.b32.xlu0 %v975, 32
  %v981 = vpop.permute.xlu0 %980
  %v984 = vadd.f32 %v964, %v979
  %v985 = vadd.f32 %v965, %v981
  %v986 = vtanh.pop %v984
  %v987 = vtanh.pop %v985
  %990 = vrot.lane.b32.xlu0 %v986, 64
  %v991 = vpop.permute.xlu0 %990
  %992 = vrot.lane.b32.xlu0 %v987, 64
  %v993 = vpop.permute.xlu0 %992
  %v996 = vmul.f32 %v957, %v991
  %v997 = vmul.f32 %v959, %v993
  %v998 = vpack.c.bf16 %v884, %v883
  %1000 = vrot.lane.b32.xlu0 %v998, 32
  %v1001 = vpop.permute.xlu0 %1000
  %v1003 = vsel %vm340, %v1001, 0
  %1005 = vmatprep.subr.bf16.mxu0 0
  %1006 = vmatpush1.bf16.msra.mxu0 %v336
  %1007 = vmatprep.subr.bf16.mxu0 0
  %1008 = vmatpush1.bf16.msra.mxu0 %v337
  %1009 = vmatprep.subr.bf16.mxu0 0
  %1010 = vmatpush1.bf16.msra.mxu0 0
  %1011 = vmatprep.subr.bf16.mxu0 0
  %1012 = vmatpush1.bf16.msra.mxu0 0
  %1013 = vmatprep.subr.bf16.mxu0 0
  %1014 = vmatpush1.bf16.msra.mxu0 0
  %1015 = vmatprep.subr.bf16.mxu0 0
  %1016 = vmatpush1.bf16.msra.mxu0 0
  %1017 = vmatprep.subr.bf16.mxu0 0
  %1018 = vmatpush1.bf16.msra.mxu0 0
  %1019 = vmatprep.subr.bf16.mxu0 0
  %1020 = vmatpush1.bf16.msra.mxu0 0
  %1021 = vmatprep.subr.bf16.mxu0 0
  %1022 = vmatpush1.bf16.msra.mxu0 0
  %1023 = vmatprep.subr.bf16.mxu0 0
  %1024 = vmatpush1.bf16.msra.mxu0 0
  %1025 = vmatprep.subr.bf16.mxu0 0
  %1026 = vmatpush1.bf16.msra.mxu0 0
  %1027 = vmatprep.subr.bf16.mxu0 0
  %1028 = vmatpush1.bf16.msra.mxu0 0
  %1029 = vmatprep.subr.bf16.mxu0 0
  %1030 = vmatpush1.bf16.msra.mxu0 0
  %1031 = vmatprep.subr.bf16.mxu0 0
  %1032 = vmatpush1.bf16.msra.mxu0 0
  %1033 = vmatprep.subr.bf16.mxu0 0
  %1034 = vmatpush1.bf16.msra.mxu0 0
  %1035 = vmatprep.subr.bf16.mxu0 0
  %1036 = vmatpush1.bf16.msra.mxu0 0
  %1037 = vmatprep.mubr.bf16.mxu0 0
  %1038 = vmatmul.mubr.bf16.gmra.mrb[0].mxu0 %v1003
  %v1039 = vpop.f32.mrb[0].mxu0
  %v1040 = vadd.f32 0.0, %v1039
  %v1041 = vpop.f32.mrb[0].mxu0
  %v1042 = vpop.f32.mrb[0].mxu0
  %v1043 = vadd.f32 0.0, %v1042
  %v1044 = vpop.f32.mrb[0].mxu0
  %1045 = vdwg.mxu0
  %v1046 = vadd.f32 %v277, %v1040
  %v1047 = vadd.f32 %v280, %v1043
  %v1048 = vxor.u32 %v1046, 2147483648
  %v1049 = vxor.u32 %v1047, 2147483648
  %v1050 = vmul.f32 %v1048, 1.442695
  %v1051 = vpow.pop %v1050
  %v1052 = vmul.f32 %v1049, 1.442695
  %v1053 = vpow.pop %v1052
  %v1054 = vadd.f32 %v1051, 1.0
  %v1055 = vadd.f32 %v1053, 1.0
  %v1056 = vrcp.pop %v1054
  %v1057 = vmul.f32 1.0, %v1056
  %v1058 = vrcp.pop %v1055
  %v1059 = vmul.f32 1.0, %v1058
  %v1060 = vmul.f32 %v1057, 2.0
  %v1061 = vmul.f32 %v1059, 2.0
  %v1062 = vsub.f32 %v1060, 1.0
  %v1063 = vsub.f32 %v1061, 1.0
  %v1064 = vmul.f32 %v1057, %v871
  %v1065 = vmul.f32 %v1059, %v872
  %1068 = vrot.lane.b32.xlu0 %v1062, 64
  %v1069 = vpop.permute.xlu0 %1068
  %1070 = vrot.lane.b32.xlu0 %v1063, 64
  %v1071 = vpop.permute.xlu0 %1070
  %v1074 = vmul.f32 %v1057, %v1069
  %v1075 = vmul.f32 %v1059, %v1071
  %1078 = vrot.lane.b32.xlu0 %v1074, 32
  %v1079 = vpop.permute.xlu0 %1078
  %1080 = vrot.lane.b32.xlu0 %v1075, 32
  %v1081 = vpop.permute.xlu0 %1080
  %v1084 = vadd.f32 %v1064, %v1079
  %v1085 = vadd.f32 %v1065, %v1081
  %v1086 = vtanh.pop %v1084
  %v1087 = vtanh.pop %v1085
  %1090 = vrot.lane.b32.xlu0 %v1086, 64
  %v1091 = vpop.permute.xlu0 %1090
  %1092 = vrot.lane.b32.xlu0 %v1087, 64
  %v1093 = vpop.permute.xlu0 %1092
  %v1096 = vmul.f32 %v1057, %v1091
  %v1097 = vmul.f32 %v1059, %v1093
  %1100 = vrot.lane.b32.xlu0 %v1096, 32
  %v1101 = vpop.permute.xlu0 %1100
  %1102 = vrot.lane.b32.xlu0 %v1097, 32
  %v1103 = vpop.permute.xlu0 %1102
  %1108 = vrot.lane.b32.xlu0 %v996, 64
  %v1109 = vpop.permute.xlu0 %1108
  %1110 = vrot.lane.b32.xlu0 %v997, 64
  %v1111 = vpop.permute.xlu0 %1110
  %v1114 = vsel %vm340, %v1101, %v1109
  %v1115 = vsel %vm340, %v1103, %v1111
  %v1116 = vpack.c.bf16 %v1115, %v1114
  %v1118 = vsel %vm193, %v1116, 0
  %1120 = vmatprep.subr.bf16.mxu0 0
  %1121 = vmatpush1.bf16.msra.mxu0 %v470
  %1122 = vmatprep.subr.bf16.mxu0 0
  %1123 = vmatpush1.bf16.msra.mxu0 %v471
  %1124 = vmatprep.subr.bf16.mxu0 0
  %1125 = vmatpush1.bf16.msra.mxu0 %v472
  %1126 = vmatprep.subr.bf16.mxu0 0
  %1127 = vmatpush1.bf16.msra.mxu0 %v473
  %1128 = vmatprep.subr.bf16.mxu0 0
  %1129 = vmatpush1.bf16.msra.mxu0 0
  %1130 = vmatprep.subr.bf16.mxu0 0
  %1131 = vmatpush1.bf16.msra.mxu0 0
  %1132 = vmatprep.subr.bf16.mxu0 0
  %1133 = vmatpush1.bf16.msra.mxu0 0
  %1134 = vmatprep.subr.bf16.mxu0 0
  %1135 = vmatpush1.bf16.msra.mxu0 0
  %1136 = vmatprep.subr.bf16.mxu0 0
  %1137 = vmatpush1.bf16.msra.mxu0 0
  %1138 = vmatprep.subr.bf16.mxu0 0
  %1139 = vmatpush1.bf16.msra.mxu0 0
  %1140 = vmatprep.subr.bf16.mxu0 0
  %1141 = vmatpush1.bf16.msra.mxu0 0
  %1142 = vmatprep.subr.bf16.mxu0 0
  %1143 = vmatpush1.bf16.msra.mxu0 0
  %1144 = vmatprep.subr.bf16.mxu0 0
  %1145 = vmatpush1.bf16.msra.mxu0 0
  %1146 = vmatprep.subr.bf16.mxu0 0
  %1147 = vmatpush1.bf16.msra.mxu0 0
  %1148 = vmatprep.subr.bf16.mxu0 0
  %1149 = vmatpush1.bf16.msra.mxu0 0
  %1150 = vmatprep.subr.bf16.mxu0 0
  %1151 = vmatpush1.bf16.msra.mxu0 0
  %1152 = vmatprep.mubr.bf16.mxu0 0
  %1153 = vmatmul.mubr.bf16.gmra.mrb[0].mxu0 %v1118
  %v1154 = vpop.f32.mrb[0].mxu0
  %v1155 = vadd.f32 %v452, %v1154
  %v1156 = vpop.f32.mrb[0].mxu0
  %v1157 = vpop.f32.mrb[0].mxu0
  %v1158 = vadd.f32 %v452, %v1157
  %v1159 = vpop.f32.mrb[0].mxu0
  %1160 = vdwg.mxu0
  %v1161 = vxor.u32 %v1155, 2147483648
  %v1162 = vxor.u32 %v1158, 2147483648
  %v1163 = vmul.f32 %v1161, 1.442695
  %v1164 = vpow.pop %v1163
  %v1165 = vmul.f32 %v1162, 1.442695
  %v1166 = vpow.pop %v1165
  %v1167 = vadd.f32 %v1164, 1.0
  %v1168 = vadd.f32 %v1166, 1.0
  %v1169 = vrcp.pop %v1167
  %v1170 = vmul.f32 1.0, %v1169
  %v1171 = vrcp.pop %v1168
  %v1172 = vmul.f32 1.0, %v1171
  %v1173 = vmul.f32 %v1170, 2.0
  %v1174 = vmul.f32 %v1172, 2.0
  %v1175 = vsub.f32 %v1173, 1.0
  %v1176 = vsub.f32 %v1174, 1.0
  %v1177 = vmul.f32 %v1170, %v984
  %v1178 = vmul.f32 %v1172, %v985
  %1181 = vrot.lane.b32.xlu0 %v1175, 64
  %v1182 = vpop.permute.xlu0 %1181
  %1183 = vrot.lane.b32.xlu0 %v1176, 64
  %v1184 = vpop.permute.xlu0 %1183
  %v1187 = vmul.f32 %v1170, %v1182
  %v1188 = vmul.f32 %v1172, %v1184
  %1191 = vrot.lane.b32.xlu0 %v1187, 32
  %v1192 = vpop.permute.xlu0 %1191
  %1193 = vrot.lane.b32.xlu0 %v1188, 32
  %v1194 = vpop.permute.xlu0 %1193
  %v1197 = vadd.f32 %v1177, %v1192
  %v1198 = vadd.f32 %v1178, %v1194
  %v1199 = vtanh.pop %v1197
  %v1200 = vtanh.pop %v1198
  %1203 = vrot.lane.b32.xlu0 %v1199, 64
  %v1204 = vpop.permute.xlu0 %1203
  %1205 = vrot.lane.b32.xlu0 %v1200, 64
  %v1206 = vpop.permute.xlu0 %1205
  %v1209 = vmul.f32 %v1170, %v1204
  %v1210 = vmul.f32 %v1172, %v1206
  %v1211 = vpack.c.bf16 %v1097, %v1096
  %1213 = vrot.lane.b32.xlu0 %v1211, 32
  %v1214 = vpop.permute.xlu0 %1213
  %v1216 = vsel %vm340, %v1214, 0
  %1218 = vmatprep.subr.bf16.mxu0 0
  %1219 = vmatpush1.bf16.msra.mxu0 %v336
  %1220 = vmatprep.subr.bf16.mxu0 0
  %1221 = vmatpush1.bf16.msra.mxu0 %v337
  %1222 = vmatprep.subr.bf16.mxu0 0
  %1223 = vmatpush1.bf16.msra.mxu0 0
  %1224 = vmatprep.subr.bf16.mxu0 0
  %1225 = vmatpush1.bf16.msra.mxu0 0
  %1226 = vmatprep.subr.bf16.mxu0 0
  %1227 = vmatpush1.bf16.msra.mxu0 0
  %1228 = vmatprep.subr.bf16.mxu0 0
  %1229 = vmatpush1.bf16.msra.mxu0 0
  %1230 = vmatprep.subr.bf16.mxu0 0
  %1231 = vmatpush1.bf16.msra.mxu0 0
  %1232 = vmatprep.subr.bf16.mxu0 0
  %1233 = vmatpush1.bf16.msra.mxu0 0
  %1234 = vmatprep.subr.bf16.mxu0 0
  %1235 = vmatpush1.bf16.msra.mxu0 0
  %1236 = vmatprep.subr.bf16.mxu0 0
  %1237 = vmatpush1.bf16.msra.mxu0 0
  %1238 = vmatprep.subr.bf16.mxu0 0
  %1239 = vmatpush1.bf16.msra.mxu0 0
  %1240 = vmatprep.subr.bf16.mxu0 0
  %1241 = vmatpush1.bf16.msra.mxu0 0
  %1242 = vmatprep.subr.bf16.mxu0 0
  %1243 = vmatpush1.bf16.msra.mxu0 0
  %1244 = vmatprep.subr.bf16.mxu0 0
  %1245 = vmatpush1.bf16.msra.mxu0 0
  %1246 = vmatprep.subr.bf16.mxu0 0
  %1247 = vmatpush1.bf16.msra.mxu0 0
  %1248 = vmatprep.subr.bf16.mxu0 0
  %1249 = vmatpush1.bf16.msra.mxu0 0
  %1250 = vmatprep.mubr.bf16.mxu0 0
  %1251 = vmatmul.mubr.bf16.gmra.mrb[0].mxu0 %v1216
  %v1252 = vpop.f32.mrb[0].mxu0
  %v1253 = vadd.f32 0.0, %v1252
  %v1254 = vpop.f32.mrb[0].mxu0
  %v1255 = vpop.f32.mrb[0].mxu0
  %v1256 = vadd.f32 0.0, %v1255
  %v1257 = vpop.f32.mrb[0].mxu0
  %1258 = vdwg.mxu0
  %v1259 = vadd.f32 %v285, %v1253
  %v1260 = vadd.f32 %v288, %v1256
  %v1261 = vxor.u32 %v1259, 2147483648
  %v1262 = vxor.u32 %v1260, 2147483648
  %v1263 = vmul.f32 %v1261, 1.442695
  %v1264 = vpow.pop %v1263
  %v1265 = vmul.f32 %v1262, 1.442695
  %v1266 = vpow.pop %v1265
  %v1267 = vadd.f32 %v1264, 1.0
  %v1268 = vadd.f32 %v1266, 1.0
  %v1269 = vrcp.pop %v1267
  %v1270 = vmul.f32 1.0, %v1269
  %v1271 = vrcp.pop %v1268
  %v1272 = vmul.f32 1.0, %v1271
  %v1273 = vmul.f32 %v1270, 2.0
  %v1274 = vmul.f32 %v1272, 2.0
  %v1275 = vsub.f32 %v1273, 1.0
  %v1276 = vsub.f32 %v1274, 1.0
  %v1277 = vmul.f32 %v1270, %v1084
  %v1278 = vmul.f32 %v1272, %v1085
  %1281 = vrot.lane.b32.xlu0 %v1275, 64
  %v1282 = vpop.permute.xlu0 %1281
  %1283 = vrot.lane.b32.xlu0 %v1276, 64
  %v1284 = vpop.permute.xlu0 %1283
  %v1287 = vmul.f32 %v1270, %v1282
  %v1288 = vmul.f32 %v1272, %v1284
  %1291 = vrot.lane.b32.xlu0 %v1287, 32
  %v1292 = vpop.permute.xlu0 %1291
  %1293 = vrot.lane.b32.xlu0 %v1288, 32
  %v1294 = vpop.permute.xlu0 %1293
  %v1297 = vadd.f32 %v1277, %v1292
  %v1298 = vadd.f32 %v1278, %v1294
  %v1299 = vtanh.pop %v1297
  %v1300 = vtanh.pop %v1298
  %1303 = vrot.lane.b32.xlu0 %v1299, 64
  %v1304 = vpop.permute.xlu0 %1303
  %1305 = vrot.lane.b32.xlu0 %v1300, 64
  %v1306 = vpop.permute.xlu0 %1305
  %v1309 = vmul.f32 %v1270, %v1304
  %v1310 = vmul.f32 %v1272, %v1306
  %1313 = vrot.lane.b32.xlu0 %v1309, 32
  %v1314 = vpop.permute.xlu0 %1313
  %1315 = vrot.lane.b32.xlu0 %v1310, 32
  %v1316 = vpop.permute.xlu0 %1315
  %1321 = vrot.lane.b32.xlu0 %v1209, 64
  %v1322 = vpop.permute.xlu0 %1321
  %1323 = vrot.lane.b32.xlu0 %v1210, 64
  %v1324 = vpop.permute.xlu0 %1323
  %v1327 = vsel %vm340, %v1314, %v1322
  %v1328 = vsel %vm340, %v1316, %v1324
  %v1329 = vpack.c.bf16 %v1328, %v1327
  %v1331 = vsel %vm193, %v1329, 0
  %1333 = vmatprep.subr.bf16.mxu0 0
  %1334 = vmatpush1.bf16.msra.mxu0 %v470
  %1335 = vmatprep.subr.bf16.mxu0 0
  %1336 = vmatpush1.bf16.msra.mxu0 %v471
  %1337 = vmatprep.subr.bf16.mxu0 0
  %1338 = vmatpush1.bf16.msra.mxu0 %v472
  %1339 = vmatprep.subr.bf16.mxu0 0
  %1340 = vmatpush1.bf16.msra.mxu0 %v473
  %1341 = vmatprep.subr.bf16.mxu0 0
  %1342 = vmatpush1.bf16.msra.mxu0 0
  %1343 = vmatprep.subr.bf16.mxu0 0
  %1344 = vmatpush1.bf16.msra.mxu0 0
  %1345 = vmatprep.subr.bf16.mxu0 0
  %1346 = vmatpush1.bf16.msra.mxu0 0
  %1347 = vmatprep.subr.bf16.mxu0 0
  %1348 = vmatpush1.bf16.msra.mxu0 0
  %1349 = vmatprep.subr.bf16.mxu0 0
  %1350 = vmatpush1.bf16.msra.mxu0 0
  %1351 = vmatprep.subr.bf16.mxu0 0
  %1352 = vmatpush1.bf16.msra.mxu0 0
  %1353 = vmatprep.subr.bf16.mxu0 0
  %1354 = vmatpush1.bf16.msra.mxu0 0
  %1355 = vmatprep.subr.bf16.mxu0 0
  %1356 = vmatpush1.bf16.msra.mxu0 0
  %1357 = vmatprep.subr.bf16.mxu0 0
  %1358 = vmatpush1.bf16.msra.mxu0 0
  %1359 = vmatprep.subr.bf16.mxu0 0
  %1360 = vmatpush1.bf16.msra.mxu0 0
  %1361 = vmatprep.subr.bf16.mxu0 0
  %1362 = vmatpush1.bf16.msra.mxu0 0
  %1363 = vmatprep.subr.bf16.mxu0 0
  %1364 = vmatpush1.bf16.msra.mxu0 0
  %1365 = vmatprep.mubr.bf16.mxu0 0
  %1366 = vmatmul.mubr.bf16.gmra.mrb[0].mxu0 %v1331
  %v1367 = vpop.f32.mrb[0].mxu0
  %v1368 = vadd.f32 %v452, %v1367
  %v1369 = vpop.f32.mrb[0].mxu0
  %v1370 = vpop.f32.mrb[0].mxu0
  %v1371 = vadd.f32 %v452, %v1370
  %v1372 = vpop.f32.mrb[0].mxu0
  %1373 = vdwg.mxu0
  %v1374 = vxor.u32 %v1368, 2147483648
  %v1375 = vxor.u32 %v1371, 2147483648
  %v1376 = vmul.f32 %v1374, 1.442695
  %v1377 = vpow.pop %v1376
  %v1378 = vmul.f32 %v1375, 1.442695
  %v1379 = vpow.pop %v1378
  %v1380 = vadd.f32 %v1377, 1.0
  %v1381 = vadd.f32 %v1379, 1.0
  %v1382 = vrcp.pop %v1380
  %v1383 = vmul.f32 1.0, %v1382
  %v1384 = vrcp.pop %v1381
  %v1385 = vmul.f32 1.0, %v1384
  %v1386 = vmul.f32 %v1383, 2.0
  %v1387 = vmul.f32 %v1385, 2.0
  %v1388 = vsub.f32 %v1386, 1.0
  %v1389 = vsub.f32 %v1387, 1.0
  %v1390 = vmul.f32 %v1383, %v1197
  %v1391 = vmul.f32 %v1385, %v1198
  %1394 = vrot.lane.b32.xlu0 %v1388, 64
  %v1395 = vpop.permute.xlu0 %1394
  %1396 = vrot.lane.b32.xlu0 %v1389, 64
  %v1397 = vpop.permute.xlu0 %1396
  %v1400 = vmul.f32 %v1383, %v1395
  %v1401 = vmul.f32 %v1385, %v1397
  %1404 = vrot.lane.b32.xlu0 %v1400, 32
  %v1405 = vpop.permute.xlu0 %1404
  %1406 = vrot.lane.b32.xlu0 %v1401, 32
  %v1407 = vpop.permute.xlu0 %1406
  %v1410 = vadd.f32 %v1390, %v1405
  %v1411 = vadd.f32 %v1391, %v1407
  %v1412 = vtanh.pop %v1410
  %v1413 = vtanh.pop %v1411
  %1416 = vrot.lane.b32.xlu0 %v1412, 64
  %v1417 = vpop.permute.xlu0 %1416
  %1418 = vrot.lane.b32.xlu0 %v1413, 64
  %v1419 = vpop.permute.xlu0 %1418
  %v1422 = vmul.f32 %v1383, %v1417
  %v1423 = vmul.f32 %v1385, %v1419
  %v1424 = vpack.c.bf16 %v1310, %v1309
  %1426 = vrot.lane.b32.xlu0 %v1424, 32
  %v1427 = vpop.permute.xlu0 %1426
  %v1429 = vsel %vm340, %v1427, 0
  %1431 = vmatprep.subr.bf16.mxu0 0
  %1432 = vmatpush1.bf16.msra.mxu0 %v336
  %1433 = vmatprep.subr.bf16.mxu0 0
  %1434 = vmatpush1.bf16.msra.mxu0 %v337
  %1435 = vmatprep.subr.bf16.mxu0 0
  %1436 = vmatpush1.bf16.msra.mxu0 0
  %1437 = vmatprep.subr.bf16.mxu0 0
  %1438 = vmatpush1.bf16.msra.mxu0 0
  %1439 = vmatprep.subr.bf16.mxu0 0
  %1440 = vmatpush1.bf16.msra.mxu0 0
  %1441 = vmatprep.subr.bf16.mxu0 0
  %1442 = vmatpush1.bf16.msra.mxu0 0
  %1443 = vmatprep.subr.bf16.mxu0 0
  %1444 = vmatpush1.bf16.msra.mxu0 0
  %1445 = vmatprep.subr.bf16.mxu0 0
  %1446 = vmatpush1.bf16.msra.mxu0 0
  %1447 = vmatprep.subr.bf16.mxu0 0
  %1448 = vmatpush1.bf16.msra.mxu0 0
  %1449 = vmatprep.subr.bf16.mxu0 0
  %1450 = vmatpush1.bf16.msra.mxu0 0
  %1451 = vmatprep.subr.bf16.mxu0 0
  %1452 = vmatpush1.bf16.msra.mxu0 0
  %1453 = vmatprep.subr.bf16.mxu0 0
  %1454 = vmatpush1.bf16.msra.mxu0 0
  %1455 = vmatprep.subr.bf16.mxu0 0
  %1456 = vmatpush1.bf16.msra.mxu0 0
  %1457 = vmatprep.subr.bf16.mxu0 0
  %1458 = vmatpush1.bf16.msra.mxu0 0
  %1459 = vmatprep.subr.bf16.mxu0 0
  %1460 = vmatpush1.bf16.msra.mxu0 0
  %1461 = vmatprep.subr.bf16.mxu0 0
  %1462 = vmatpush1.bf16.msra.mxu0 0
  %1463 = vmatprep.mubr.bf16.mxu0 0
  %1464 = vmatmul.mubr.bf16.gmra.mrb[0].mxu0 %v1429
  %v1465 = vpop.f32.mrb[0].mxu0
  %v1466 = vadd.f32 0.0, %v1465
  %v1467 = vpop.f32.mrb[0].mxu0
  %v1468 = vpop.f32.mrb[0].mxu0
  %v1469 = vadd.f32 0.0, %v1468
  %v1470 = vpop.f32.mrb[0].mxu0
  %1471 = vdwg.mxu0
  %v1472 = vadd.f32 %v293, %v1466
  %v1473 = vadd.f32 %v296, %v1469
  %v1474 = vxor.u32 %v1472, 2147483648
  %v1475 = vxor.u32 %v1473, 2147483648
  %v1476 = vmul.f32 %v1474, 1.442695
  %v1477 = vpow.pop %v1476
  %v1478 = vmul.f32 %v1475, 1.442695
  %v1479 = vpow.pop %v1478
  %v1480 = vadd.f32 %v1477, 1.0
  %v1481 = vadd.f32 %v1479, 1.0
  %v1482 = vrcp.pop %v1480
  %v1483 = vmul.f32 1.0, %v1482
  %v1484 = vrcp.pop %v1481
  %v1485 = vmul.f32 1.0, %v1484
  %v1486 = vmul.f32 %v1483, 2.0
  %v1487 = vmul.f32 %v1485, 2.0
  %v1488 = vsub.f32 %v1486, 1.0
  %v1489 = vsub.f32 %v1487, 1.0
  %v1490 = vmul.f32 %v1483, %v1297
  %v1491 = vmul.f32 %v1485, %v1298
  %1494 = vrot.lane.b32.xlu0 %v1488, 64
  %v1495 = vpop.permute.xlu0 %1494
  %1496 = vrot.lane.b32.xlu0 %v1489, 64
  %v1497 = vpop.permute.xlu0 %1496
  %v1500 = vmul.f32 %v1483, %v1495
  %v1501 = vmul.f32 %v1485, %v1497
  %1504 = vrot.lane.b32.xlu0 %v1500, 32
  %v1505 = vpop.permute.xlu0 %1504
  %1506 = vrot.lane.b32.xlu0 %v1501, 32
  %v1507 = vpop.permute.xlu0 %1506
  %v1510 = vadd.f32 %v1490, %v1505
  %v1511 = vadd.f32 %v1491, %v1507
  %v1512 = vtanh.pop %v1510
  %v1513 = vtanh.pop %v1511
  %1516 = vrot.lane.b32.xlu0 %v1512, 64
  %v1517 = vpop.permute.xlu0 %1516
  %1518 = vrot.lane.b32.xlu0 %v1513, 64
  %v1519 = vpop.permute.xlu0 %1518
  %v1522 = vmul.f32 %v1483, %v1517
  %v1523 = vmul.f32 %v1485, %v1519
  %1526 = vrot.lane.b32.xlu0 %v1522, 32
  %v1527 = vpop.permute.xlu0 %1526
  %1528 = vrot.lane.b32.xlu0 %v1523, 32
  %v1529 = vpop.permute.xlu0 %1528
  %1534 = vrot.lane.b32.xlu0 %v1422, 64
  %v1535 = vpop.permute.xlu0 %1534
  %1536 = vrot.lane.b32.xlu0 %v1423, 64
  %v1537 = vpop.permute.xlu0 %1536
  %v1540 = vsel %vm340, %v1527, %v1535
  %v1541 = vsel %vm340, %v1529, %v1537
  %v1542 = vpack.c.bf16 %v1541, %v1540
  %v1544 = vsel %vm193, %v1542, 0
  %1546 = vmatprep.subr.bf16.mxu0 0
  %1547 = vmatpush1.bf16.msra.mxu0 %v470
  %1548 = vmatprep.subr.bf16.mxu0 0
  %1549 = vmatpush1.bf16.msra.mxu0 %v471
  %1550 = vmatprep.subr.bf16.mxu0 0
  %1551 = vmatpush1.bf16.msra.mxu0 %v472
  %1552 = vmatprep.subr.bf16.mxu0 0
  %1553 = vmatpush1.bf16.msra.mxu0 %v473
  %1554 = vmatprep.subr.bf16.mxu0 0
  %1555 = vmatpush1.bf16.msra.mxu0 0
  %1556 = vmatprep.subr.bf16.mxu0 0
  %1557 = vmatpush1.bf16.msra.mxu0 0
  %1558 = vmatprep.subr.bf16.mxu0 0
  %1559 = vmatpush1.bf16.msra.mxu0 0
  %1560 = vmatprep.subr.bf16.mxu0 0
  %1561 = vmatpush1.bf16.msra.mxu0 0
  %1562 = vmatprep.subr.bf16.mxu0 0
  %1563 = vmatpush1.bf16.msra.mxu0 0
  %1564 = vmatprep.subr.bf16.mxu0 0
  %1565 = vmatpush1.bf16.msra.mxu0 0
  %1566 = vmatprep.subr.bf16.mxu0 0
  %1567 = vmatpush1.bf16.msra.mxu0 0
  %1568 = vmatprep.subr.bf16.mxu0 0
  %1569 = vmatpush1.bf16.msra.mxu0 0
  %1570 = vmatprep.subr.bf16.mxu0 0
  %1571 = vmatpush1.bf16.msra.mxu0 0
  %1572 = vmatprep.subr.bf16.mxu0 0
  %1573 = vmatpush1.bf16.msra.mxu0 0
  %1574 = vmatprep.subr.bf16.mxu0 0
  %1575 = vmatpush1.bf16.msra.mxu0 0
  %1576 = vmatprep.subr.bf16.mxu0 0
  %1577 = vmatpush1.bf16.msra.mxu0 0
  %1578 = vmatprep.mubr.bf16.mxu0 0
  %1579 = vmatmul.mubr.bf16.gmra.mrb[0].mxu0 %v1544
  %v1580 = vpop.f32.mrb[0].mxu0
  %v1581 = vadd.f32 %v452, %v1580
  %v1582 = vpop.f32.mrb[0].mxu0
  %v1583 = vpop.f32.mrb[0].mxu0
  %v1584 = vadd.f32 %v452, %v1583
  %v1585 = vpop.f32.mrb[0].mxu0
  %1586 = vdwg.mxu0
  %v1587 = vxor.u32 %v1581, 2147483648
  %v1588 = vxor.u32 %v1584, 2147483648
  %v1589 = vmul.f32 %v1587, 1.442695
  %v1590 = vpow.pop %v1589
  %v1591 = vmul.f32 %v1588, 1.442695
  %v1592 = vpow.pop %v1591
  %v1593 = vadd.f32 %v1590, 1.0
  %v1594 = vadd.f32 %v1592, 1.0
  %v1595 = vrcp.pop %v1593
  %v1596 = vmul.f32 1.0, %v1595
  %v1597 = vrcp.pop %v1594
  %v1598 = vmul.f32 1.0, %v1597
  %v1599 = vmul.f32 %v1596, 2.0
  %v1600 = vmul.f32 %v1598, 2.0
  %v1601 = vsub.f32 %v1599, 1.0
  %v1602 = vsub.f32 %v1600, 1.0
  %v1603 = vmul.f32 %v1596, %v1410
  %v1604 = vmul.f32 %v1598, %v1411
  %1607 = vrot.lane.b32.xlu0 %v1601, 64
  %v1608 = vpop.permute.xlu0 %1607
  %1609 = vrot.lane.b32.xlu0 %v1602, 64
  %v1610 = vpop.permute.xlu0 %1609
  %v1613 = vmul.f32 %v1596, %v1608
  %v1614 = vmul.f32 %v1598, %v1610
  %1617 = vrot.lane.b32.xlu0 %v1613, 32
  %v1618 = vpop.permute.xlu0 %1617
  %1619 = vrot.lane.b32.xlu0 %v1614, 32
  %v1620 = vpop.permute.xlu0 %1619
  %v1623 = vadd.f32 %v1603, %v1618
  %v1624 = vadd.f32 %v1604, %v1620
  %v1625 = vtanh.pop %v1623
  %v1626 = vtanh.pop %v1624
  %1629 = vrot.lane.b32.xlu0 %v1625, 64
  %v1630 = vpop.permute.xlu0 %1629
  %1631 = vrot.lane.b32.xlu0 %v1626, 64
  %v1632 = vpop.permute.xlu0 %1631
  %v1635 = vmul.f32 %v1596, %v1630
  %v1636 = vmul.f32 %v1598, %v1632
  %v1637 = vpack.c.bf16 %v1523, %v1522
  %1639 = vrot.lane.b32.xlu0 %v1637, 32
  %v1640 = vpop.permute.xlu0 %1639
  %v1642 = vsel %vm340, %v1640, 0
  %1644 = vmatprep.subr.bf16.mxu0 0
  %1645 = vmatpush1.bf16.msra.mxu0 %v336
  %1646 = vmatprep.subr.bf16.mxu0 0
  %1647 = vmatpush1.bf16.msra.mxu0 %v337
  %1648 = vmatprep.subr.bf16.mxu0 0
  %1649 = vmatpush1.bf16.msra.mxu0 0
  %1650 = vmatprep.subr.bf16.mxu0 0
  %1651 = vmatpush1.bf16.msra.mxu0 0
  %1652 = vmatprep.subr.bf16.mxu0 0
  %1653 = vmatpush1.bf16.msra.mxu0 0
  %1654 = vmatprep.subr.bf16.mxu0 0
  %1655 = vmatpush1.bf16.msra.mxu0 0
  %1656 = vmatprep.subr.bf16.mxu0 0
  %1657 = vmatpush1.bf16.msra.mxu0 0
  %1658 = vmatprep.subr.bf16.mxu0 0
  %1659 = vmatpush1.bf16.msra.mxu0 0
  %1660 = vmatprep.subr.bf16.mxu0 0
  %1661 = vmatpush1.bf16.msra.mxu0 0
  %1662 = vmatprep.subr.bf16.mxu0 0
  %1663 = vmatpush1.bf16.msra.mxu0 0
  %1664 = vmatprep.subr.bf16.mxu0 0
  %1665 = vmatpush1.bf16.msra.mxu0 0
  %1666 = vmatprep.subr.bf16.mxu0 0
  %1667 = vmatpush1.bf16.msra.mxu0 0
  %1668 = vmatprep.subr.bf16.mxu0 0
  %1669 = vmatpush1.bf16.msra.mxu0 0
  %1670 = vmatprep.subr.bf16.mxu0 0
  %1671 = vmatpush1.bf16.msra.mxu0 0
  %1672 = vmatprep.subr.bf16.mxu0 0
  %1673 = vmatpush1.bf16.msra.mxu0 0
  %1674 = vmatprep.subr.bf16.mxu0 0
  %1675 = vmatpush1.bf16.msra.mxu0 0
  %1676 = vmatprep.mubr.bf16.mxu0 0
  %1677 = vmatmul.mubr.bf16.gmra.mrb[0].mxu0 %v1642
  %v1678 = vpop.f32.mrb[0].mxu0
  %v1679 = vadd.f32 0.0, %v1678
  %v1680 = vpop.f32.mrb[0].mxu0
  %v1681 = vpop.f32.mrb[0].mxu0
  %v1682 = vadd.f32 0.0, %v1681
  %v1683 = vpop.f32.mrb[0].mxu0
  %1684 = vdwg.mxu0
  %v1685 = vadd.f32 %v301, %v1679
  %v1686 = vadd.f32 %v304, %v1682
  %v1687 = vxor.u32 %v1685, 2147483648
  %v1688 = vxor.u32 %v1686, 2147483648
  %v1689 = vmul.f32 %v1687, 1.442695
  %v1690 = vpow.pop %v1689
  %v1691 = vmul.f32 %v1688, 1.442695
  %v1692 = vpow.pop %v1691
  %v1693 = vadd.f32 %v1690, 1.0
  %v1694 = vadd.f32 %v1692, 1.0
  %v1695 = vrcp.pop %v1693
  %v1696 = vmul.f32 1.0, %v1695
  %v1697 = vrcp.pop %v1694
  %v1698 = vmul.f32 1.0, %v1697
  %v1699 = vmul.f32 %v1696, 2.0
  %v1700 = vmul.f32 %v1698, 2.0
  %v1701 = vsub.f32 %v1699, 1.0
  %v1702 = vsub.f32 %v1700, 1.0
  %v1703 = vmul.f32 %v1696, %v1510
  %v1704 = vmul.f32 %v1698, %v1511
  %1707 = vrot.lane.b32.xlu0 %v1701, 64
  %v1708 = vpop.permute.xlu0 %1707
  %1709 = vrot.lane.b32.xlu0 %v1702, 64
  %v1710 = vpop.permute.xlu0 %1709
  %v1713 = vmul.f32 %v1696, %v1708
  %v1714 = vmul.f32 %v1698, %v1710
  %1717 = vrot.lane.b32.xlu0 %v1713, 32
  %v1718 = vpop.permute.xlu0 %1717
  %1719 = vrot.lane.b32.xlu0 %v1714, 32
  %v1720 = vpop.permute.xlu0 %1719
  %v1723 = vadd.f32 %v1703, %v1718
  %v1724 = vadd.f32 %v1704, %v1720
  %v1725 = vtanh.pop %v1723
  %v1726 = vtanh.pop %v1724
  %1729 = vrot.lane.b32.xlu0 %v1725, 64
  %v1730 = vpop.permute.xlu0 %1729
  %1731 = vrot.lane.b32.xlu0 %v1726, 64
  %v1732 = vpop.permute.xlu0 %1731
  %v1735 = vmul.f32 %v1696, %v1730
  %v1736 = vmul.f32 %v1698, %v1732
  %1739 = vrot.lane.b32.xlu0 %v1735, 32
  %v1740 = vpop.permute.xlu0 %1739
  %1741 = vrot.lane.b32.xlu0 %v1736, 32
  %v1742 = vpop.permute.xlu0 %1741
  %1747 = vrot.lane.b32.xlu0 %v1635, 64
  %v1748 = vpop.permute.xlu0 %1747
  %1749 = vrot.lane.b32.xlu0 %v1636, 64
  %v1750 = vpop.permute.xlu0 %1749
  %v1753 = vsel %vm340, %v1740, %v1748
  %v1754 = vsel %vm340, %v1742, %v1750
  %v1755 = vpack.c.bf16 %v1754, %v1753
  %v1757 = vsel %vm193, %v1755, 0
  %1759 = vmatprep.subr.bf16.mxu0 0
  %1760 = vmatpush1.bf16.msra.mxu0 %v470
  %1761 = vmatprep.subr.bf16.mxu0 0
  %1762 = vmatpush1.bf16.msra.mxu0 %v471
  %1763 = vmatprep.subr.bf16.mxu0 0
  %1764 = vmatpush1.bf16.msra.mxu0 %v472
  %1765 = vmatprep.subr.bf16.mxu0 0
  %1766 = vmatpush1.bf16.msra.mxu0 %v473
  %1767 = vmatprep.subr.bf16.mxu0 0
  %1768 = vmatpush1.bf16.msra.mxu0 0
  %1769 = vmatprep.subr.bf16.mxu0 0
  %1770 = vmatpush1.bf16.msra.mxu0 0
  %1771 = vmatprep.subr.bf16.mxu0 0
  %1772 = vmatpush1.bf16.msra.mxu0 0
  %1773 = vmatprep.subr.bf16.mxu0 0
  %1774 = vmatpush1.bf16.msra.mxu0 0
  %1775 = vmatprep.subr.bf16.mxu0 0
  %1776 = vmatpush1.bf16.msra.mxu0 0
  %1777 = vmatprep.subr.bf16.mxu0 0
  %1778 = vmatpush1.bf16.msra.mxu0 0
  %1779 = vmatprep.subr.bf16.mxu0 0
  %1780 = vmatpush1.bf16.msra.mxu0 0
  %1781 = vmatprep.subr.bf16.mxu0 0
  %1782 = vmatpush1.bf16.msra.mxu0 0
  %1783 = vmatprep.subr.bf16.mxu0 0
  %1784 = vmatpush1.bf16.msra.mxu0 0
  %1785 = vmatprep.subr.bf16.mxu0 0
  %1786 = vmatpush1.bf16.msra.mxu0 0
  %1787 = vmatprep.subr.bf16.mxu0 0
  %1788 = vmatpush1.bf16.msra.mxu0 0
  %1789 = vmatprep.subr.bf16.mxu0 0
  %1790 = vmatpush1.bf16.msra.mxu0 0
  %1791 = vmatprep.mubr.bf16.mxu0 0
  %1792 = vmatmul.mubr.bf16.gmra.mrb[0].mxu0 %v1757
  %v1793 = vpop.f32.mrb[0].mxu0
  %v1794 = vadd.f32 %v452, %v1793
  %v1795 = vpop.f32.mrb[0].mxu0
  %v1796 = vpop.f32.mrb[0].mxu0
  %v1797 = vadd.f32 %v452, %v1796
  %v1798 = vpop.f32.mrb[0].mxu0
  %1799 = vdwg.mxu0
  %v1800 = vxor.u32 %v1794, 2147483648
  %v1801 = vxor.u32 %v1797, 2147483648
  %v1802 = vmul.f32 %v1800, 1.442695
  %v1803 = vpow.pop %v1802
  %v1804 = vmul.f32 %v1801, 1.442695
  %v1805 = vpow.pop %v1804
  %v1806 = vadd.f32 %v1803, 1.0
  %v1807 = vadd.f32 %v1805, 1.0
  %v1808 = vrcp.pop %v1806
  %v1809 = vmul.f32 1.0, %v1808
  %v1810 = vrcp.pop %v1807
  %v1811 = vmul.f32 1.0, %v1810
  %v1812 = vmul.f32 %v1809, 2.0
  %v1813 = vmul.f32 %v1811, 2.0
  %v1814 = vsub.f32 %v1812, 1.0
  %v1815 = vsub.f32 %v1813, 1.0
  %v1816 = vmul.f32 %v1809, %v1623
  %v1817 = vmul.f32 %v1811, %v1624
  %1820 = vrot.lane.b32.xlu0 %v1814, 64
  %v1821 = vpop.permute.xlu0 %1820
  %1822 = vrot.lane.b32.xlu0 %v1815, 64
  %v1823 = vpop.permute.xlu0 %1822
  %v1826 = vmul.f32 %v1809, %v1821
  %v1827 = vmul.f32 %v1811, %v1823
  %1830 = vrot.lane.b32.xlu0 %v1826, 32
  %v1831 = vpop.permute.xlu0 %1830
  %1832 = vrot.lane.b32.xlu0 %v1827, 32
  %v1833 = vpop.permute.xlu0 %1832
  %v1836 = vadd.f32 %v1816, %v1831
  %v1837 = vadd.f32 %v1817, %v1833
  %v1838 = vtanh.pop %v1836
  %v1839 = vtanh.pop %v1837
  %1842 = vrot.lane.b32.xlu0 %v1838, 64
  %v1843 = vpop.permute.xlu0 %1842
  %1844 = vrot.lane.b32.xlu0 %v1839, 64
  %v1845 = vpop.permute.xlu0 %1844
  %v1848 = vmul.f32 %v1809, %v1843
  %v1849 = vmul.f32 %v1811, %v1845
  %v1850 = vpack.c.bf16 %v1736, %v1735
  %1852 = vrot.lane.b32.xlu0 %v1850, 32
  %v1853 = vpop.permute.xlu0 %1852
  %v1855 = vsel %vm340, %v1853, 0
  %1857 = vmatprep.subr.bf16.mxu0 0
  %1858 = vmatpush1.bf16.msra.mxu0 %v336
  %1859 = vmatprep.subr.bf16.mxu0 0
  %1860 = vmatpush1.bf16.msra.mxu0 %v337
  %1861 = vmatprep.subr.bf16.mxu0 0
  %1862 = vmatpush1.bf16.msra.mxu0 0
  %1863 = vmatprep.subr.bf16.mxu0 0
  %1864 = vmatpush1.bf16.msra.mxu0 0
  %1865 = vmatprep.subr.bf16.mxu0 0
  %1866 = vmatpush1.bf16.msra.mxu0 0
  %1867 = vmatprep.subr.bf16.mxu0 0
  %1868 = vmatpush1.bf16.msra.mxu0 0
  %1869 = vmatprep.subr.bf16.mxu0 0
  %1870 = vmatpush1.bf16.msra.mxu0 0
  %1871 = vmatprep.subr.bf16.mxu0 0
  %1872 = vmatpush1.bf16.msra.mxu0 0
  %1873 = vmatprep.subr.bf16.mxu0 0
  %1874 = vmatpush1.bf16.msra.mxu0 0
  %1875 = vmatprep.subr.bf16.mxu0 0
  %1876 = vmatpush1.bf16.msra.mxu0 0
  %1877 = vmatprep.subr.bf16.mxu0 0
  %1878 = vmatpush1.bf16.msra.mxu0 0
  %1879 = vmatprep.subr.bf16.mxu0 0
  %1880 = vmatpush1.bf16.msra.mxu0 0
  %1881 = vmatprep.subr.bf16.mxu0 0
  %1882 = vmatpush1.bf16.msra.mxu0 0
  %1883 = vmatprep.subr.bf16.mxu0 0
  %1884 = vmatpush1.bf16.msra.mxu0 0
  %1885 = vmatprep.subr.bf16.mxu0 0
  %1886 = vmatpush1.bf16.msra.mxu0 0
  %1887 = vmatprep.subr.bf16.mxu0 0
  %1888 = vmatpush1.bf16.msra.mxu0 0
  %1889 = vmatprep.mubr.bf16.mxu0 0
  %1890 = vmatmul.mubr.bf16.gmra.mrb[0].mxu0 %v1855
  %v1891 = vpop.f32.mrb[0].mxu0
  %v1892 = vadd.f32 0.0, %v1891
  %v1893 = vpop.f32.mrb[0].mxu0
  %v1894 = vpop.f32.mrb[0].mxu0
  %v1895 = vadd.f32 0.0, %v1894
  %v1896 = vpop.f32.mrb[0].mxu0
  %1897 = vdwg.mxu0
  %v1898 = vadd.f32 %v309, %v1892
  %v1899 = vadd.f32 %v312, %v1895
  %v1900 = vxor.u32 %v1898, 2147483648
  %v1901 = vxor.u32 %v1899, 2147483648
  %v1902 = vmul.f32 %v1900, 1.442695
  %v1903 = vpow.pop %v1902
  %v1904 = vmul.f32 %v1901, 1.442695
  %v1905 = vpow.pop %v1904
  %v1906 = vadd.f32 %v1903, 1.0
  %v1907 = vadd.f32 %v1905, 1.0
  %v1908 = vrcp.pop %v1906
  %v1909 = vmul.f32 1.0, %v1908
  %v1910 = vrcp.pop %v1907
  %v1911 = vmul.f32 1.0, %v1910
  %v1912 = vmul.f32 %v1909, 2.0
  %v1913 = vmul.f32 %v1911, 2.0
  %v1914 = vsub.f32 %v1912, 1.0
  %v1915 = vsub.f32 %v1913, 1.0
  %v1916 = vmul.f32 %v1909, %v1723
  %v1917 = vmul.f32 %v1911, %v1724
  %1920 = vrot.lane.b32.xlu0 %v1914, 64
  %v1921 = vpop.permute.xlu0 %1920
  %1922 = vrot.lane.b32.xlu0 %v1915, 64
  %v1923 = vpop.permute.xlu0 %1922
  %v1926 = vmul.f32 %v1909, %v1921
  %v1927 = vmul.f32 %v1911, %v1923
  %1930 = vrot.lane.b32.xlu0 %v1926, 32
  %v1931 = vpop.permute.xlu0 %1930
  %1932 = vrot.lane.b32.xlu0 %v1927, 32
  %v1933 = vpop.permute.xlu0 %1932
  %v1936 = vadd.f32 %v1916, %v1931
  %v1937 = vadd.f32 %v1917, %v1933
  %v1938 = vtanh.pop %v1936
  %v1939 = vtanh.pop %v1937
  %1942 = vrot.lane.b32.xlu0 %v1938, 64
  %v1943 = vpop.permute.xlu0 %1942
  %1944 = vrot.lane.b32.xlu0 %v1939, 64
  %v1945 = vpop.permute.xlu0 %1944
  %v1948 = vmul.f32 %v1909, %v1943
  %v1949 = vmul.f32 %v1911, %v1945
  %1952 = vrot.lane.b32.xlu0 %v1948, 32
  %v1953 = vpop.permute.xlu0 %1952
  %1954 = vrot.lane.b32.xlu0 %v1949, 32
  %v1955 = vpop.permute.xlu0 %1954
  %1960 = vrot.lane.b32.xlu0 %v1848, 64
  %v1961 = vpop.permute.xlu0 %1960
  %1962 = vrot.lane.b32.xlu0 %v1849, 64
  %v1963 = vpop.permute.xlu0 %1962
  %v1966 = vsel %vm340, %v1953, %v1961
  %v1967 = vsel %vm340, %v1955, %v1963
  %v1968 = vpack.c.bf16 %v1967, %v1966
  %v1970 = vsel %vm193, %v1968, 0
  %1972 = vmatprep.subr.bf16.mxu0 0
  %1973 = vmatpush1.bf16.msra.mxu0 %v470
  %1974 = vmatprep.subr.bf16.mxu0 0
  %1975 = vmatpush1.bf16.msra.mxu0 %v471
  %1976 = vmatprep.subr.bf16.mxu0 0
  %1977 = vmatpush1.bf16.msra.mxu0 %v472
  %1978 = vmatprep.subr.bf16.mxu0 0
  %1979 = vmatpush1.bf16.msra.mxu0 %v473
  %1980 = vmatprep.subr.bf16.mxu0 0
  %1981 = vmatpush1.bf16.msra.mxu0 0
  %1982 = vmatprep.subr.bf16.mxu0 0
  %1983 = vmatpush1.bf16.msra.mxu0 0
  %1984 = vmatprep.subr.bf16.mxu0 0
  %1985 = vmatpush1.bf16.msra.mxu0 0
  %1986 = vmatprep.subr.bf16.mxu0 0
  %1987 = vmatpush1.bf16.msra.mxu0 0
  %1988 = vmatprep.subr.bf16.mxu0 0
  %1989 = vmatpush1.bf16.msra.mxu0 0
  %1990 = vmatprep.subr.bf16.mxu0 0
  %1991 = vmatpush1.bf16.msra.mxu0 0
  %1992 = vmatprep.subr.bf16.mxu0 0
  %1993 = vmatpush1.bf16.msra.mxu0 0
  %1994 = vmatprep.subr.bf16.mxu0 0
  %1995 = vmatpush1.bf16.msra.mxu0 0
  %1996 = vmatprep.subr.bf16.mxu0 0
  %1997 = vmatpush1.bf16.msra.mxu0 0
  %1998 = vmatprep.subr.bf16.mxu0 0
  %1999 = vmatpush1.bf16.msra.mxu0 0
  %2000 = vmatprep.subr.bf16.mxu0 0
  %2001 = vmatpush1.bf16.msra.mxu0 0
  %2002 = vmatprep.subr.bf16.mxu0 0
  %2003 = vmatpush1.bf16.msra.mxu0 0
  %2004 = vmatprep.mubr.bf16.mxu0 0
  %2005 = vmatmul.mubr.bf16.gmra.mrb[0].mxu0 %v1970
  %v2006 = vpop.f32.mrb[0].mxu0
  %v2007 = vadd.f32 %v452, %v2006
  %v2008 = vpop.f32.mrb[0].mxu0
  %v2009 = vpop.f32.mrb[0].mxu0
  %v2010 = vadd.f32 %v452, %v2009
  %v2011 = vpop.f32.mrb[0].mxu0
  %2012 = vdwg.mxu0
  %v2013 = vxor.u32 %v2007, 2147483648
  %v2014 = vxor.u32 %v2010, 2147483648
  %v2015 = vmul.f32 %v2013, 1.442695
  %v2016 = vpow.pop %v2015
  %v2017 = vmul.f32 %v2014, 1.442695
  %v2018 = vpow.pop %v2017
  %v2019 = vadd.f32 %v2016, 1.0
  %v2020 = vadd.f32 %v2018, 1.0
  %v2021 = vrcp.pop %v2019
  %v2022 = vmul.f32 1.0, %v2021
  %v2023 = vrcp.pop %v2020
  %v2024 = vmul.f32 1.0, %v2023
  %v2025 = vmul.f32 %v2022, 2.0
  %v2026 = vmul.f32 %v2024, 2.0
  %v2027 = vsub.f32 %v2025, 1.0
  %v2028 = vsub.f32 %v2026, 1.0
  %v2029 = vmul.f32 %v2022, %v1836
  %v2030 = vmul.f32 %v2024, %v1837
  %2033 = vrot.lane.b32.xlu0 %v2027, 64
  %v2034 = vpop.permute.xlu0 %2033
  %2035 = vrot.lane.b32.xlu0 %v2028, 64
  %v2036 = vpop.permute.xlu0 %2035
  %v2039 = vmul.f32 %v2022, %v2034
  %v2040 = vmul.f32 %v2024, %v2036
  %2043 = vrot.lane.b32.xlu0 %v2039, 32
  %v2044 = vpop.permute.xlu0 %2043
  %2045 = vrot.lane.b32.xlu0 %v2040, 32
  %v2046 = vpop.permute.xlu0 %2045
  %v2049 = vadd.f32 %v2029, %v2044
  %v2050 = vadd.f32 %v2030, %v2046
  %v2051 = vtanh.pop %v2049
  %v2052 = vtanh.pop %v2050
  %2055 = vrot.lane.b32.xlu0 %v2051, 64
  %v2056 = vpop.permute.xlu0 %2055
  %2057 = vrot.lane.b32.xlu0 %v2052, 64
  %v2058 = vpop.permute.xlu0 %2057
  %v2061 = vmul.f32 %v2022, %v2056
  %v2062 = vmul.f32 %v2024, %v2058
  %v2063 = vpack.c.bf16 %v2062, %v2061
  %v2064 = vld [vmem:[%s6] sm:$0xf]
  %v2065 = vld [vmem:[%s6 + $0x4] sm:$0xf]
  %v2066 = vld [vmem:[%s6 + $0x8] sm:$0xf]
  %v2067 = vld [vmem:[%s6 + $0xc] sm:$0xf]
  %v2068 = vld [vmem:[#allocation2] sm:$0x1]
  %v2070 = vlaneseq
  %v2071 = vshrl.u32 %v2070, 7
  %v2072 = vsub.s32 0, %v2071
  %v2073 = vrot.slane %v2068, %v2072
  %2076 = vrot.lane.b32.xlu0 %v2063, 32
  %v2077 = vpop.permute.xlu0 %2076
  %v2082 = vunpack.c.l.b16 %v2064
  %v2083 = vunpack.c.l.b16 %v2065
  %v2084 = vunpack.c.l.b16 %v2066
  %v2085 = vunpack.c.l.b16 %v2067
  %v2086 = vpack.c.b16 %v2083, %v2082
  %v2087 = vpack.c.b16 %v2085, %v2084
  %v2091 = vsel %vm340, %v2077, 0
  %2093 = vmatprep.subr.bf16.mxu0 0
  %2094 = vmatpush1.bf16.msra.mxu0 %v2086
  %2095 = vmatprep.subr.bf16.mxu0 0
  %2096 = vmatpush1.bf16.msra.mxu0 %v2087
  %2097 = vmatprep.subr.bf16.mxu0 0
  %2098 = vmatpush1.bf16.msra.mxu0 0
  %2099 = vmatprep.subr.bf16.mxu0 0
  %2100 = vmatpush1.bf16.msra.mxu0 0
  %2101 = vmatprep.subr.bf16.mxu0 0
  %2102 = vmatpush1.bf16.msra.mxu0 0
  %2103 = vmatprep.subr.bf16.mxu0 0
  %2104 = vmatpush1.bf16.msra.mxu0 0
  %2105 = vmatprep.subr.bf16.mxu0 0
  %2106 = vmatpush1.bf16.msra.mxu0 0
  %2107 = vmatprep.subr.bf16.mxu0 0
  %2108 = vmatpush1.bf16.msra.mxu0 0
  %2109 = vmatprep.subr.bf16.mxu0 0
  %2110 = vmatpush1.bf16.msra.mxu0 0
  %2111 = vmatprep.subr.bf16.mxu0 0
  %2112 = vmatpush1.bf16.msra.mxu0 0
  %2113 = vmatprep.subr.bf16.mxu0 0
  %2114 = vmatpush1.bf16.msra.mxu0 0
  %2115 = vmatprep.subr.bf16.mxu0 0
  %2116 = vmatpush1.bf16.msra.mxu0 0
  %2117 = vmatprep.subr.bf16.mxu0 0
  %2118 = vmatpush1.bf16.msra.mxu0 0
  %2119 = vmatprep.subr.bf16.mxu0 0
  %2120 = vmatpush1.bf16.msra.mxu0 0
  %2121 = vmatprep.subr.bf16.mxu0 0
  %2122 = vmatpush1.bf16.msra.mxu0 0
  %2123 = vmatprep.subr.bf16.mxu0 0
  %2124 = vmatpush1.bf16.msra.mxu0 0
  %2125 = vmatprep.mubr.bf16.mxu0 0
  %2126 = vmatmul.mubr.bf16.gmra.mrb[0].mxu0 %v2091
  %v2127 = vpop.f32.mrb[0].mxu0
  %v2128 = vadd.f32 %v2073, %v2127
  %v2129 = vpop.f32.mrb[0].mxu0
  %v2130 = vpop.f32.mrb[0].mxu0
  %v2131 = vadd.f32 %v2073, %v2130
  %v2132 = vpop.f32.mrb[0].mxu0
  %2133 = vdwg.mxu0
  %v2134 = vxor.u32 %v2128, 2147483648
  %v2135 = vxor.u32 %v2131, 2147483648
  %v2136 = vmul.f32 %v2134, 1.442695
  %v2137 = vpow.pop %v2136
  %v2138 = vmul.f32 %v2135, 1.442695
  %v2139 = vpow.pop %v2138
  %v2140 = vadd.f32 %v2137, 1.0
  %v2141 = vadd.f32 %v2139, 1.0
  %v2142 = vrcp.pop %v2140
  %v2143 = vmul.f32 1.0, %v2142
  %v2144 = vrcp.pop %v2141
  %v2145 = vmul.f32 1.0, %v2144
  %vm2146 = vcmask 7168
  %2147 = vst.msk [vmem:[%s8] sm:$0xff] %vm2146, %v2143
  %2148 = vst.msk [vmem:[%s8 + $0x8] sm:$0xff] %vm2146, %v2145
  // Predicated region
  $region34: #{tpu_custom_call.1} parent=0 // pred_check
    _
  $region35: #{tpu_custom_call.1} parent=0 // pred_check_branch
    %2150 = sbr.rel (0) target = $region37
  $region36: #{tpu_custom_call.1} parent=0 // pred_region
    _
  $region37: #{tpu_custom_call.1} parent=0 // pred_fallthru
    _
  // Predicated region
  $region38: #{tpu_custom_call.1} parent=0 // pred_check
    _
  $region39: #{tpu_custom_call.1} parent=0 // pred_check_branch
    %2152 = sbr.rel (0) target = $region41
  $region40: #{tpu_custom_call.1} parent=0 // pred_region
    _
  $region41: #{tpu_custom_call.1} parent=0 // pred_fallthru
    _

</llo_original>
